<compile_context>
chip_gen: v7x
topology: tpu7x:2x2x1
jax: 0.10.0
libtpu: 0.0.40
codegen_flags: <defaults>
</compile_context>

<pallas_src>
import jax
import jax.numpy as jnp
from jax.experimental import pallas as pl
from jax.experimental.pallas import tpu as pltpu


def ban_kernel(v_ref, q_ref, wv_ref, bv_ref, wq_ref, bq_ref,
               hmat_ref, hbias_ref, hsum_ref, hbsum_ref, poolbn_ref, bnshift_ref,
               logits_ref, att_ref):
    BB, v_num, Vp = v_ref.shape
    _, q_num, Qp = q_ref.shape
    h_out, Kp = hmat_ref.shape
    M = h_out * v_num
    h_dim = poolbn_ref.shape[1]

    # FCNet projections (weight-normed Linear + ReLU), folded over the whole batch
    # block: one bf16 MXU pass each, f32 accumulation, f32 bias add + ReLU.
    v2 = v_ref[...].reshape(BB * v_num, Vp).astype(jnp.bfloat16)
    q2 = q_ref[...].reshape(BB * q_num, Qp).astype(jnp.bfloat16)
    v3 = jnp.maximum(
        jnp.dot(v2, wv_ref[...], preferred_element_type=jnp.float32) + bv_ref[...],
        0.0).reshape(BB, v_num, Kp)
    q3 = jnp.maximum(
        jnp.dot(q2, wq_ref[...], preferred_element_type=jnp.float32) + bq_ref[...],
        0.0).reshape(BB, q_num, Kp)
    v3b = v3.astype(jnp.bfloat16)
    q3b = q3.astype(jnp.bfloat16)

    # Stacked bilinear attention, all heads in one batched bf16 MXU pass.
    # Row m = h*v_num + i of vsc carries h_mat[h,:] * v_[b,i,:]; built by a broadcast
    # multiply of the unreplicated (h_out, Kp) h_mat (no concatenate / replication DMA).
    vsc = (v3b[:, None, :, :] * hmat_ref[...][None, :, None, :]).reshape(BB, M, Kp)
    # Output layout (BB, q_num, M): the larger free dim M sits on the matmul-N / lane
    # axis -> dense MXU occupancy and a lane-dense att store.  The wrapper untangles
    # (h, i) from the lane axis afterwards.
    att = jnp.einsum('bqk,bmk->bqm', q3b, vsc,
                     preferred_element_type=jnp.float32)
    att = att + hbias_ref[...][None, :, :]            # single (1,1,M) broadcast bias add
    att_ref[...] = att.astype(att_ref.dtype)          # single bulk (optionally bf16) store

    # Attention pooling.  It is linear in the heads, so it is computed directly from
    # hsum = sum_h h_mat[h,:] and the summed bias, independent of the att layout.
    # These matmuls are tiny (<= v_num*q_num*K per batch element); kept in f32.
    qh = q3 * hsum_ref[...]                                              # (BB, q_num, Kp)
    a_sum = jnp.einsum('bqk,bvk->bqv', qh, v3,
                       preferred_element_type=jnp.float32) + hbsum_ref[...]
    t = jnp.einsum('bqv,bvk->bqk', a_sum, v3,
                   preferred_element_type=jnp.float32)                   # contract over v_num
    logits_k = jnp.sum(q3 * t, axis=1)                                   # (BB, Kp)

    # AvgPool1d(k, stride=k) * k == grouped sum over k, expressed as one small matmul
    # with the eval-mode BatchNorm scale pre-folded into poolbn; then add the BN shift.
    pooled = jnp.dot(logits_k, poolbn_ref[...], preferred_element_type=jnp.float32)
    logits_ref[...] = (pooled + bnshift_ref[...]).reshape(BB, 1, h_dim)


def _round_up(x, m):
    return ((x + m - 1) // m) * m


def _vmem_capacity_bytes():
    """Per-TensorCore VMEM capacity by TPU generation (conservative fallback)."""
    try:
        kind = jax.devices()[0].device_kind.lower()
    except Exception:
        return 64 << 20
    if "7" in kind:                       # v7x: 64 MiB per TensorCore
        return 64 << 20
    if "v5" in kind or "v6" in kind:      # v5e / v6e: 128 MiB
        return 128 << 20
    return 64 << 20                       # unknown / older: be conservative


def _vmem_bytes(BB, v_num, q_num, Vp, Qp, Kp, M, h_out, h_dim, att_bytes):
    """Rough per-step VMEM estimate: double-buffered streamed blocks + resident
    operands (counted double-buffered, conservatively) + live intermediates."""
    f32, bf16 = 4, 2
    stream = 2 * (BB * v_num * Vp * f32 + BB * q_num * Qp * f32
                  + BB * q_num * M * att_bytes + BB * h_dim * f32)
    resident = 2 * ((Vp + Qp + h_out) * Kp * bf16
                    + (2 * Kp + M + 1 + h_dim) * f32 + Kp * h_dim * f32)
    interm = (BB * v_num * Kp * (f32 + bf16) + BB * q_num * Kp * (f32 + bf16)
              + BB * M * Kp * bf16 + BB * q_num * M * f32
              + 2 * BB * q_num * Kp * f32 + BB * q_num * v_num * f32
              + BB * Kp * f32)
    return stream + resident + interm


def _choose_block_b(B, v_num, q_num, Vp, Qp, Kp, M, h_out, h_dim, att_bytes, budget):
    # Keep >= 2 grid steps so the 'parallel' batch axis can shard across the two
    # TensorCores of a v7x chip (harmless elsewhere); grow BB up to the VMEM budget
    # to amortize the ~0.35us per-grid-step pipeline overhead.
    cap = min(32, max(1, B // 2)) if B >= 2 else 1
    bb = 1
    for cand in range(1, cap + 1):
        if _vmem_bytes(cand, v_num, q_num, Vp, Qp, Kp, M, h_out, h_dim,
                       att_bytes) <= budget:
            bb = cand
    # Prefer a block that divides B (no wasted padded-batch compute) if close enough.
    for d in range(bb, 0, -1):
        if B % d == 0:
            if 2 * d >= bb:
                return d
            break
    return bb


def ban_forward(v, q, wv, bv, wq, bq, h_mat, h_bias, pool_mat, bn_scale, bn_shift,
                *, block_b=None, att_dtype=jnp.bfloat16):
    """BANLayer forward (eval mode, softmax=False, h_out <= c).

    Returns (logits[B, h_dim] f32, att_maps[B, h_out, v_num, q_num] att_dtype).
    att_dtype defaults to bf16 to halve the dominant HBM writeback; pass
    jnp.float32 to reproduce the module's exact output dtype.
    """
    B, v_num, v_dim = v.shape
    _, q_num, q_dim = q.shape
    h_out, K = h_mat.shape
    h_dim = pool_mat.shape[1]
    M = h_out * v_num

    # Zero-pad feature dims to full 128-lane vregs / MXU tiles (exact: padded weight
    # columns are zero, so the extra activations are ReLU(0)=0 and contribute nothing).
    Vp, Qp, Kp = _round_up(v_dim, 128), _round_up(q_dim, 128), _round_up(K, 128)

    att_bytes = jnp.dtype(att_dtype).itemsize
    vmem_cap = _vmem_capacity_bytes()
    if block_b is None:
        block_b = _choose_block_b(B, v_num, q_num, Vp, Qp, Kp, M, h_out, h_dim,
                                  att_bytes, budget=vmem_cap // 2)
    BB = max(1, min(B, block_b))
    Bp = pl.cdiv(B, BB) * BB

    vp = jnp.pad(v, ((0, Bp - B), (0, 0), (0, Vp - v_dim)))
    qp = jnp.pad(q, ((0, Bp - B), (0, 0), (0, Qp - q_dim)))
    # Weights pre-cast to bf16 (MXU operands); biases stay f32 (added post-accumulate).
    wvp = jnp.pad(wv, ((0, Vp - v_dim), (0, Kp - K))).astype(jnp.bfloat16)
    wqp = jnp.pad(wq, ((0, Qp - q_dim), (0, Kp - K))).astype(jnp.bfloat16)
    bvp = jnp.pad(bv, ((0, 0), (0, Kp - K)))
    bqp = jnp.pad(bq, ((0, 0), (0, Kp - K)))
    hmat_p = jnp.pad(h_mat, ((0, 0), (0, Kp - K))).astype(jnp.bfloat16)    # (h_out, Kp)
    # Per-row bias for the stacked (m = h*v_num + i) head axis, laid out along lanes.
    hbias_row = jnp.repeat(h_bias, v_num, axis=0).reshape(1, M)            # (1, M)
    # Head-summed bilinear weights/bias: attention pooling is linear in the heads.
    hsum = jnp.pad(jnp.sum(h_mat, axis=0, keepdims=True), ((0, 0), (0, Kp - K)))
    hbias_sum = jnp.sum(h_bias).reshape(1, 1)
    # AvgPool1d(k)*k == grouped sum; fold the eval-mode BN scale into it.
    poolbn = jnp.pad(pool_mat * bn_scale, ((0, Kp - K), (0, 0)))           # (Kp, h_dim)

    const2 = lambda b: (0, 0)
    grid_spec = pltpu.PrefetchScalarGridSpec(
        num_scalar_prefetch=0,
        grid=(Bp // BB,),
        in_specs=[
            pl.BlockSpec((BB, v_num, Vp), lambda b: (b, 0, 0)),
            pl.BlockSpec((BB, q_num, Qp), lambda b: (b, 0, 0)),
            pl.BlockSpec((Vp, Kp), const2),
            pl.BlockSpec((1, Kp), const2),
            pl.BlockSpec((Qp, Kp), const2),
            pl.BlockSpec((1, Kp), const2),
            pl.BlockSpec((h_out, Kp), const2),
            pl.BlockSpec((1, M), const2),
            pl.BlockSpec((1, Kp), const2),
            pl.BlockSpec((1, 1), const2),
            pl.BlockSpec((Kp, h_dim), const2),
            pl.BlockSpec((1, h_dim), const2),
        ],
        out_specs=[
            pl.BlockSpec((BB, 1, h_dim), lambda b: (b, 0, 0)),
            pl.BlockSpec((BB, q_num, M), lambda b: (b, 0, 0)),
        ],
    )

    est = _vmem_bytes(BB, v_num, q_num, Vp, Qp, Kp, M, h_out, h_dim, att_bytes)
    vmem_limit = int(min(vmem_cap, max(2 * est + (16 << 20), 64 << 20)))

    logits3, att_qm = pl.pallas_call(
        ban_kernel,
        grid_spec=grid_spec,
        out_shape=[
            jax.ShapeDtypeStruct((Bp, 1, h_dim), jnp.float32),
            jax.ShapeDtypeStruct((Bp, q_num, M), att_dtype),
        ],
        compiler_params=pltpu.CompilerParams(
            dimension_semantics=("parallel",),
            vmem_limit_bytes=vmem_limit),
    )(vp, qp, wvp, bvp, wqp, bqp, hmat_p, hbias_row, hsum, hbias_sum, poolbn, bn_shift)

    logits = logits3[:B, 0, :]
    # Untangle the stacked head axis: att_qm[b, j, h*v_num + i] -> att[b, h, i, j].
    att_maps = att_qm[:B].reshape(B, q_num, h_out, v_num).transpose(0, 2, 3, 1)
    return logits, att_maps


def reference(v, q, wv, bv, wq, bq, h_mat, h_bias, k, bn_scale, bn_shift):
    """Plain-JAX f32 reference mirroring the PyTorch forward (eval mode, softmax=False)."""
    hp = jax.lax.Precision.HIGHEST
    v_ = jax.nn.relu(jnp.matmul(v, wv, precision=hp) + bv)
    q_ = jax.nn.relu(jnp.matmul(q, wq, precision=hp) + bq)
    att = jnp.einsum('hk,bvk,bqk->bhvq', h_mat, v_, q_,
                     precision=hp) + h_bias.reshape(1, -1, 1, 1)
    logits = jnp.einsum('bvk,bhvq,bqk->bk', v_, att, q_, precision=hp)   # summed over heads
    B = logits.shape[0]
    logits = logits.reshape(B, -1, k).mean(-1) * k                       # AvgPool1d(k) * k
    logits = logits * bn_scale + bn_shift
    return logits, att


if __name__ == "__main__":
    # Small BANLayer config: v_dim=32, q_dim=24, h_dim=32, h_out=4, k=3 (h_out <= c=32 path)
    B, v_num, q_num = 2, 16, 8
    v_dim, q_dim, h_dim, h_out, k = 32, 24, 32, 4, 3
    K = h_dim * k

    key = jax.random.PRNGKey(0)
    ks = jax.random.split(key, 10)

    v = jax.random.normal(ks[0], (B, v_num, v_dim), jnp.float32)
    q = jax.random.normal(ks[1], (B, q_num, q_dim), jnp.float32)

    # weight_norm(Linear, dim=None): w_eff = g * V / ||V||_F  (folded here in glue)
    def wnorm(V, g):
        return g * V / jnp.sqrt(jnp.sum(V * V))

    Vv = jax.random.normal(ks[2], (v_dim, K), jnp.float32) * 0.1
    gv = jnp.abs(jax.random.normal(ks[3], ())) + 0.5
    wv = wnorm(Vv, gv)
    bv = jax.random.normal(ks[4], (1, K), jnp.float32) * 0.1

    Vq = jax.random.normal(ks[5], (q_dim, K), jnp.float32) * 0.1
    gq = jnp.abs(jax.random.normal(ks[6], ())) + 0.5
    wq = wnorm(Vq, gq)
    bq = jax.random.normal(ks[7], (1, K), jnp.float32) * 0.1

    # h_mat: (1, h_out, 1, K).normal_()  -> stored as (h_out, K); h_bias -> (h_out, 1)
    h_mat = jax.random.normal(ks[8], (h_out, K), jnp.float32)
    h_bias = jax.random.normal(ks[9], (h_out, 1), jnp.float32)

    # Pooling matrix implementing AvgPool1d(k, stride=k) * k  (i.e. grouped sum).
    pool_mat = (jnp.arange(K)[:, None] // k == jnp.arange(h_dim)[None, :]).astype(jnp.float32)

    # BatchNorm1d(h_dim) in eval mode with default params/stats.
    # TODO(synk): training-mode BatchNorm (batch statistics), dropout, softmax=True and
    # the h_out>c (h_net) path are not implemented; eval-mode forward only.
    eps = 1e-5
    bn_scale = jnp.full((1, h_dim), 1.0 / jnp.sqrt(1.0 + eps), jnp.float32)
    bn_shift = jnp.zeros((1, h_dim), jnp.float32)

    logits, att_maps = ban_forward(v, q, wv, bv, wq, bq, h_mat, h_bias,
                                   pool_mat, bn_scale, bn_shift)
    jax.block_until_ready((logits, att_maps))

    ref_logits, ref_att = reference(v, q, wv, bv, wq, bq, h_mat, h_bias, k,
                                    bn_scale, bn_shift)

    assert logits.shape == (B, h_dim)
    assert att_maps.shape == (B, h_out, v_num, q_num)
    # Tolerances reflect bf16 MXU operands and bf16 att storage (f32 accumulation kept).
    assert jnp.allclose(att_maps.astype(jnp.float32), ref_att, rtol=2e-2, atol=2e-2)
    assert jnp.allclose(logits, ref_logits, rtol=2e-2, atol=2e-2)

    print("KERNEL_OK")
</pallas_src>

<mosaic_0001>
module attributes {stable_mosaic.version = 11 : i64} {
  func.func @ban_kernel(%arg0: i32, %arg1: memref<1x16x128xf32, #tpu.memory_space<vmem>>, %arg2: memref<1x8x128xf32, #tpu.memory_space<vmem>>, %arg3: memref<128x128xbf16, #tpu.memory_space<vmem>>, %arg4: memref<1x128xf32, #tpu.memory_space<vmem>>, %arg5: memref<128x128xbf16, #tpu.memory_space<vmem>>, %arg6: memref<1x128xf32, #tpu.memory_space<vmem>>, %arg7: memref<4x128xbf16, #tpu.memory_space<vmem>>, %arg8: memref<1x64xf32, #tpu.memory_space<vmem>>, %arg9: memref<1x128xf32, #tpu.memory_space<vmem>>, %arg10: memref<1x1xf32, #tpu.memory_space<vmem>>, %arg11: memref<128x32xf32, #tpu.memory_space<vmem>>, %arg12: memref<1x32xf32, #tpu.memory_space<vmem>>, %arg13: memref<1x1x32xf32, #tpu.memory_space<vmem>>, %arg14: memref<1x8x64xbf16, #tpu.memory_space<vmem>>) attributes {dimension_semantics = [#tpu.dimension_semantics<parallel>], iteration_bounds = array<i64: 2>, scalar_prefetch = 0 : i64, scratch_operands = 0 : i64, tpu.core_type = #tpu.core_type<tc>, window_params = [{transform_indices = @transform_0, window_bounds = array<i64: 1, 16, 128>}, {transform_indices = @transform_1, window_bounds = array<i64: 1, 8, 128>}, {pipeline_mode = #tpu.pipeline_mode<synchronous>, transform_indices = @transform_2, window_bounds = array<i64: 128, 128>}, {pipeline_mode = #tpu.pipeline_mode<synchronous>, transform_indices = @transform_3, window_bounds = array<i64: 1, 128>}, {pipeline_mode = #tpu.pipeline_mode<synchronous>, transform_indices = @transform_4, window_bounds = array<i64: 128, 128>}, {pipeline_mode = #tpu.pipeline_mode<synchronous>, transform_indices = @transform_5, window_bounds = array<i64: 1, 128>}, {pipeline_mode = #tpu.pipeline_mode<synchronous>, transform_indices = @transform_6, window_bounds = array<i64: 4, 128>}, {pipeline_mode = #tpu.pipeline_mode<synchronous>, transform_indices = @transform_7, window_bounds = array<i64: 1, 64>}, {pipeline_mode = #tpu.pipeline_mode<synchronous>, transform_indices = @transform_8, window_bounds = array<i64: 1, 128>}, {pipeline_mode = #tpu.pipeline_mode<synchronous>, transform_indices = @transform_9, window_bounds = array<i64: 1, 1>}, {pipeline_mode = #tpu.pipeline_mode<synchronous>, transform_indices = @transform_10, window_bounds = array<i64: 128, 32>}, {pipeline_mode = #tpu.pipeline_mode<synchronous>, transform_indices = @transform_11, window_bounds = array<i64: 1, 32>}, {transform_indices = @transform_12, window_bounds = array<i64: 1, 1, 32>}, {transform_indices = @transform_13, window_bounds = array<i64: 1, 8, 64>}]} {
    %c0 = arith.constant 0 : index
    %c0_0 = arith.constant 0 : index
    %c0_1 = arith.constant 0 : index
    %0 = vector.load %arg1[%c0, %c0_0, %c0_1] : memref<1x16x128xf32, #tpu.memory_space<vmem>>, vector<1x16x128xf32>
    %1 = vector.shape_cast %0 : vector<1x16x128xf32> to vector<16x128xf32>
    %2 = arith.truncf %1 : vector<16x128xf32> to vector<16x128xbf16>
    %c0_2 = arith.constant 0 : index
    %c0_3 = arith.constant 0 : index
    %c0_4 = arith.constant 0 : index
    %3 = vector.load %arg2[%c0_2, %c0_3, %c0_4] : memref<1x8x128xf32, #tpu.memory_space<vmem>>, vector<1x8x128xf32>
    %4 = vector.shape_cast %3 : vector<1x8x128xf32> to vector<8x128xf32>
    %5 = arith.truncf %4 : vector<8x128xf32> to vector<8x128xbf16>
    %c0_5 = arith.constant 0 : index
    %c0_6 = arith.constant 0 : index
    %6 = vector.load %arg3[%c0_5, %c0_6] : memref<128x128xbf16, #tpu.memory_space<vmem>>, vector<128x128xbf16>
    %cst = arith.constant dense<0.000000e+00> : vector<16x128xf32>
    %7 = tpu.matmul %2, %6, %cst {dimension_numbers = #tpu.dot_dimension_numbers<[1], [0], [0], [1], [0, 0, 1, 1], [], []>} : vector<16x128xbf16>, vector<128x128xbf16>, vector<16x128xf32> -> vector<16x128xf32>
    %c0_7 = arith.constant 0 : index
    %c0_8 = arith.constant 0 : index
    %8 = vector.load %arg4[%c0_7, %c0_8] : memref<1x128xf32, #tpu.memory_space<vmem>>, vector<1x128xf32>
    %9 = vector.broadcast %8 : vector<1x128xf32> to vector<16x128xf32>
    %10 = arith.addf %7, %9 : vector<16x128xf32>
    %cst_9 = arith.constant 0.000000e+00 : f32
    %11 = vector.broadcast %cst_9 : f32 to vector<16x128xf32>
    %12 = arith.maximumf %10, %11 : vector<16x128xf32>
    %13 = vector.shape_cast %12 : vector<16x128xf32> to vector<1x16x128xf32>
    %c0_10 = arith.constant 0 : index
    %c0_11 = arith.constant 0 : index
    %14 = vector.load %arg5[%c0_10, %c0_11] : memref<128x128xbf16, #tpu.memory_space<vmem>>, vector<128x128xbf16>
    %cst_12 = arith.constant dense<0.000000e+00> : vector<8x128xf32>
    %15 = tpu.matmul %5, %14, %cst_12 {dimension_numbers = #tpu.dot_dimension_numbers<[1], [0], [0], [1], [0, 0, 1, 1], [], []>} : vector<8x128xbf16>, vector<128x128xbf16>, vector<8x128xf32> -> vector<8x128xf32>
    %c0_13 = arith.constant 0 : index
    %c0_14 = arith.constant 0 : index
    %16 = vector.load %arg6[%c0_13, %c0_14] : memref<1x128xf32, #tpu.memory_space<vmem>>, vector<1x128xf32>
    %17 = vector.broadcast %16 : vector<1x128xf32> to vector<8x128xf32>
    %18 = arith.addf %15, %17 : vector<8x128xf32>
    %cst_15 = arith.constant 0.000000e+00 : f32
    %19 = vector.broadcast %cst_15 : f32 to vector<8x128xf32>
    %20 = arith.maximumf %18, %19 : vector<8x128xf32>
    %21 = vector.shape_cast %20 : vector<8x128xf32> to vector<1x8x128xf32>
    %22 = arith.truncf %13 : vector<1x16x128xf32> to vector<1x16x128xbf16>
    %23 = arith.truncf %21 : vector<1x8x128xf32> to vector<1x8x128xbf16>
    %24 = vector.shape_cast %22 : vector<1x16x128xbf16> to vector<1x1x16x128xbf16>
    %c0_16 = arith.constant 0 : index
    %c0_17 = arith.constant 0 : index
    %25 = vector.load %arg7[%c0_16, %c0_17] : memref<4x128xbf16, #tpu.memory_space<vmem>>, vector<4x128xbf16>
    %26 = vector.shape_cast %25 : vector<4x128xbf16> to vector<1x4x1x128xbf16>
    %27 = vector.broadcast %24 : vector<1x1x16x128xbf16> to vector<1x4x16x128xbf16>
    %28 = vector.broadcast %26 : vector<1x4x1x128xbf16> to vector<1x4x16x128xbf16>
    %29 = arith.mulf %27, %28 : vector<1x4x16x128xbf16>
    %30 = vector.shape_cast %29 : vector<1x4x16x128xbf16> to vector<1x64x128xbf16>
    "tpu.trace_start"() <{level = 10 : i32, message = "bqk,bmk->bqm"}> : () -> ()
    %cst_18 = arith.constant dense<0.000000e+00> : vector<1x8x64xf32>
    %31 = tpu.matmul %23, %30, %cst_18 {dimension_numbers = #tpu.dot_dimension_numbers<[2], [2], [1], [1], [0, 0, 0, 1, 1, 1], [0], [0]>} : vector<1x8x128xbf16>, vector<1x64x128xbf16>, vector<1x8x64xf32> -> vector<1x8x64xf32>
    "tpu.trace_stop"() : () -> ()
    %c0_19 = arith.constant 0 : index
    %c0_20 = arith.constant 0 : index
    %32 = vector.load %arg8[%c0_19, %c0_20] : memref<1x64xf32, #tpu.memory_space<vmem>>, vector<1x64xf32>
    %33 = vector.shape_cast %32 : vector<1x64xf32> to vector<1x1x64xf32>
    %34 = vector.broadcast %33 : vector<1x1x64xf32> to vector<1x8x64xf32>
    %35 = arith.addf %31, %34 : vector<1x8x64xf32>
    %36 = arith.truncf %35 : vector<1x8x64xf32> to vector<1x8x64xbf16>
    %c0_21 = arith.constant 0 : index
    %c0_22 = arith.constant 0 : index
    %c0_23 = arith.constant 0 : index
    %37 = vector.load %arg14[%c0_21, %c0_22, %c0_23] : memref<1x8x64xbf16, #tpu.memory_space<vmem>>, vector<1x8x64xbf16>
    tpu.vector_store %arg14[%c0_21, %c0_22, %c0_23], %36 {strides = array<i32>} : memref<1x8x64xbf16, #tpu.memory_space<vmem>>, vector<1x8x64xbf16>,
    %c0_24 = arith.constant 0 : index
    %c0_25 = arith.constant 0 : index
    %38 = vector.load %arg9[%c0_24, %c0_25] : memref<1x128xf32, #tpu.memory_space<vmem>>, vector<1x128xf32>
    %39 = vector.shape_cast %38 : vector<1x128xf32> to vector<1x1x128xf32>
    %40 = vector.broadcast %39 : vector<1x1x128xf32> to vector<1x8x128xf32>
    %41 = arith.mulf %21, %40 : vector<1x8x128xf32>
    "tpu.trace_start"() <{level = 10 : i32, message = "bqk,bvk->bqv"}> : () -> ()
    %cst_26 = arith.constant dense<0.000000e+00> : vector<1x8x16xf32>
    %42 = tpu.matmul %41, %13, %cst_26 {dimension_numbers = #tpu.dot_dimension_numbers<[2], [2], [1], [1], [0, 0, 0, 1, 1, 1], [0], [0]>} : vector<1x8x128xf32>, vector<1x16x128xf32>, vector<1x8x16xf32> -> vector<1x8x16xf32>
    "tpu.trace_stop"() : () -> ()
    %c0_27 = arith.constant 0 : index
    %c0_28 = arith.constant 0 : index
    %43 = vector.load %arg10[%c0_27, %c0_28] : memref<1x1xf32, #tpu.memory_space<vmem>>, vector<1x1xf32>
    %44 = vector.shape_cast %43 : vector<1x1xf32> to vector<1x1x1xf32>
    %45 = vector.broadcast %44 : vector<1x1x1xf32> to vector<1x8x16xf32>
    %46 = arith.addf %42, %45 : vector<1x8x16xf32>
    "tpu.trace_start"() <{level = 10 : i32, message = "bqv,bvk->bqk"}> : () -> ()
    %cst_29 = arith.constant dense<0.000000e+00> : vector<1x8x128xf32>
    %47 = tpu.matmul %46, %13, %cst_29 {dimension_numbers = #tpu.dot_dimension_numbers<[2], [1], [1], [2], [0, 0, 0, 1, 1, 2], [0], [0]>} : vector<1x8x16xf32>, vector<1x16x128xf32>, vector<1x8x128xf32> -> vector<1x8x128xf32>
    "tpu.trace_stop"() : () -> ()
    %48 = arith.mulf %21, %47 : vector<1x8x128xf32>
    %cst_30 = arith.constant dense<0.000000e+00> : vector<1x128xf32>
    %49 = vector.multi_reduction <add>, %48, %cst_30 [1] : vector<1x8x128xf32> to vector<1x128xf32>
    %c0_31 = arith.constant 0 : index
    %c0_32 = arith.constant 0 : index
    %50 = vector.load %arg11[%c0_31, %c0_32] : memref<128x32xf32, #tpu.memory_space<vmem>>, vector<128x32xf32>
    %cst_33 = arith.constant dense<0.000000e+00> : vector<1x32xf32>
    %51 = tpu.matmul %49, %50, %cst_33 {dimension_numbers = #tpu.dot_dimension_numbers<[1], [0], [0], [1], [0, 0, 1, 1], [], []>} : vector<1x128xf32>, vector<128x32xf32>, vector<1x32xf32> -> vector<1x32xf32>
    %c0_34 = arith.constant 0 : index
    %c0_35 = arith.constant 0 : index
    %52 = vector.load %arg12[%c0_34, %c0_35] : memref<1x32xf32, #tpu.memory_space<vmem>>, vector<1x32xf32>
    %53 = arith.addf %51, %52 : vector<1x32xf32>
    %54 = vector.shape_cast %53 : vector<1x32xf32> to vector<1x1x32xf32>
    %c0_36 = arith.constant 0 : index
    %c0_37 = arith.constant 0 : index
    %c0_38 = arith.constant 0 : index
    %55 = vector.load %arg13[%c0_36, %c0_37, %c0_38] : memref<1x1x32xf32, #tpu.memory_space<vmem>>, vector<1x1x32xf32>
    tpu.vector_store %arg13[%c0_36, %c0_37, %c0_38], %54 {strides = array<i32>} : memref<1x1x32xf32, #tpu.memory_space<vmem>>, vector<1x1x32xf32>,
    return
  }
  func.func @transform_0(%arg0: i32) -> (i32, i32, i32) {
    %c0_i32 = arith.constant 0 : i32
    %c0_i32_0 = arith.constant 0 : i32
    %c0_i32_1 = arith.constant 0 : i32
    return %arg0, %c0_i32, %c0_i32_0 : i32, i32, i32
  }
  func.func @transform_1(%arg0: i32) -> (i32, i32, i32) {
    %c0_i32 = arith.constant 0 : i32
    %c0_i32_0 = arith.constant 0 : i32
    %c0_i32_1 = arith.constant 0 : i32
    return %arg0, %c0_i32, %c0_i32_0 : i32, i32, i32
  }
  func.func @transform_2(%arg0: i32) -> (i32, i32) {
    %c0_i32 = arith.constant 0 : i32
    %c0_i32_0 = arith.constant 0 : i32
    %c0_i32_1 = arith.constant 0 : i32
    return %c0_i32, %c0_i32_0 : i32, i32
  }
  func.func @transform_3(%arg0: i32) -> (i32, i32) {
    %c0_i32 = arith.constant 0 : i32
    %c0_i32_0 = arith.constant 0 : i32
    %c0_i32_1 = arith.constant 0 : i32
    return %c0_i32, %c0_i32_0 : i32, i32
  }
  func.func @transform_4(%arg0: i32) -> (i32, i32) {
    %c0_i32 = arith.constant 0 : i32
    %c0_i32_0 = arith.constant 0 : i32
    %c0_i32_1 = arith.constant 0 : i32
    return %c0_i32, %c0_i32_0 : i32, i32
  }
  func.func @transform_5(%arg0: i32) -> (i32, i32) {
    %c0_i32 = arith.constant 0 : i32
    %c0_i32_0 = arith.constant 0 : i32
    %c0_i32_1 = arith.constant 0 : i32
    return %c0_i32, %c0_i32_0 : i32, i32
  }
  func.func @transform_6(%arg0: i32) -> (i32, i32) {
    %c0_i32 = arith.constant 0 : i32
    %c0_i32_0 = arith.constant 0 : i32
    %c0_i32_1 = arith.constant 0 : i32
    return %c0_i32, %c0_i32_0 : i32, i32
  }
  func.func @transform_7(%arg0: i32) -> (i32, i32) {
    %c0_i32 = arith.constant 0 : i32
    %c0_i32_0 = arith.constant 0 : i32
    %c0_i32_1 = arith.constant 0 : i32
    return %c0_i32, %c0_i32_0 : i32, i32
  }
  func.func @transform_8(%arg0: i32) -> (i32, i32) {
    %c0_i32 = arith.constant 0 : i32
    %c0_i32_0 = arith.constant 0 : i32
    %c0_i32_1 = arith.constant 0 : i32
    return %c0_i32, %c0_i32_0 : i32, i32
  }
  func.func @transform_9(%arg0: i32) -> (i32, i32) {
    %c0_i32 = arith.constant 0 : i32
    %c0_i32_0 = arith.constant 0 : i32
    %c0_i32_1 = arith.constant 0 : i32
    return %c0_i32, %c0_i32_0 : i32, i32
  }
  func.func @transform_10(%arg0: i32) -> (i32, i32) {
    %c0_i32 = arith.constant 0 : i32
    %c0_i32_0 = arith.constant 0 : i32
    %c0_i32_1 = arith.constant 0 : i32
    return %c0_i32, %c0_i32_0 : i32, i32
  }
  func.func @transform_11(%arg0: i32) -> (i32, i32) {
    %c0_i32 = arith.constant 0 : i32
    %c0_i32_0 = arith.constant 0 : i32
    %c0_i32_1 = arith.constant 0 : i32
    return %c0_i32, %c0_i32_0 : i32, i32
  }
  func.func @transform_12(%arg0: i32) -> (i32, i32, i32) {
    %c0_i32 = arith.constant 0 : i32
    %c0_i32_0 = arith.constant 0 : i32
    %c0_i32_1 = arith.constant 0 : i32
    return %arg0, %c0_i32, %c0_i32_0 : i32, i32, i32
  }
  func.func @transform_13(%arg0: i32) -> (i32, i32, i32) {
    %c0_i32 = arith.constant 0 : i32
    %c0_i32_0 = arith.constant 0 : i32
    %c0_i32_1 = arith.constant 0 : i32
    return %arg0, %c0_i32, %c0_i32_0 : i32, i32, i32
  }
}

</mosaic_0001>

<llo_original>
// kernel: tpu_custom_call.1
$region0: #{tpu_custom_call.1}
  #allocation0 [shape = 'u32[]', space=smem, size = 0x4, offset = 0x4, fixed_abs, tag = 'smem constant byte address 0x4 - core index']
  #allocation1 [shape = 'u32[144,128]{1,0:T(1,128)}', space=vmem, size = 0x12000, scoped, tag = 'internal scratch']
  #allocation2 [shape = 'f32[1,1]{1,0:T(1,128)S(1)}', space=vmem, size = 0x200, scoped, tag = 'scoped memory for tpu_custom_call.1']
  %s0 = inlined_call_operand.hbm [shape: f32[2,16,128], index: 0, kind: input, shape index: {}]
  %s1 = inlined_call_operand.hbm [shape: f32[2,8,128], index: 1, kind: input, shape index: {}]
  %s2 = inlined_call_operand.hbm [shape: bf16[128,128], index: 2, kind: input, shape index: {}]
  %s3 = inlined_call_operand.hbm [shape: f32[1,128], index: 3, kind: input, shape index: {}]
  %s4 = inlined_call_operand.hbm [shape: bf16[128,128], index: 4, kind: input, shape index: {}]
  %s5 = inlined_call_operand.hbm [shape: f32[1,128], index: 5, kind: input, shape index: {}]
  %s6 = inlined_call_operand.hbm [shape: bf16[4,128], index: 6, kind: input, shape index: {}]
  %s7 = inlined_call_operand.hbm [shape: f32[1,64], index: 7, kind: input, shape index: {}]
  %s8 = inlined_call_operand.hbm [shape: f32[1,128], index: 8, kind: input, shape index: {}]
  %s9 = inlined_call_operand.<no memory space> [shape: f32[1,1], index: 9, kind: input, shape index: {}]
  %s10 = inlined_call_operand.hbm [shape: f32[128,32], index: 10, kind: input, shape index: {}]
  %s11 = inlined_call_operand.hbm [shape: f32[1,32], index: 11, kind: input, shape index: {}]
  %s12 = inlined_call_operand.hbm [shape: f32[2,1,32], index: 12, kind: output, shape index: {0}]
  %s13 = inlined_call_operand.hbm [shape: bf16[2,8,64], index: 13, kind: output, shape index: {1}]
  %14 = xla_tuple %s12, %s13
  %s15 = sld [smem:[#allocation0]]
  $region133: #{tpu_custom_call.1} parent=0
    _
  %s17 = ssub.s32 1, %s15
  %s18 = scalar_select 0, %s17, %s15
  %v19 = vstv %s9
  %20 = vst [vmem:[#allocation2] sm:$0x1] %v19
  $region1: #{tpu_custom_call.1} parent=0
    #allocation3 [shape = 'u8[16384]{0}', space=vmem, size = 0x4000, scoped, tag = 'input window, operand 0']
    #allocation4 [shape = 's32[2]{0}', space=sflag, size = 0x8, scoped, tag = 'scoped memory for tpu_custom_call.1']
    #allocation5 [shape = 's32[2]{0}', space=sflag, size = 0x8, scoped, tag = 'scoped memory for tpu_custom_call.1']
    #allocation6 [shape = 'u8[8192]{0}', space=vmem, size = 0x2000, scoped, tag = 'input window, operand 1']
    #allocation7 [shape = 's32[2]{0}', space=sflag, size = 0x8, scoped, tag = 'scoped memory for tpu_custom_call.1']
    #allocation8 [shape = 'u8[32768]{0}', space=vmem, size = 0x8000, scoped, tag = 'input window, operand 2, single buffered']
    #allocation9 [shape = 'u8[512]{0}', space=vmem, size = 0x400, scoped, tag = 'input window, operand 3, single buffered']
    #allocation10 [shape = 's32[1]{0}', space=sflag, size = 0x4, scoped, tag = 'scoped memory for tpu_custom_call.1']
    #allocation11 [shape = 'u8[32768]{0}', space=vmem, size = 0x8000, scoped, tag = 'input window, operand 4, single buffered']
    #allocation12 [shape = 'u8[512]{0}', space=vmem, size = 0x400, scoped, tag = 'input window, operand 5, single buffered']
    #allocation13 [shape = 's32[1]{0}', space=sflag, size = 0x4, scoped, tag = 'scoped memory for tpu_custom_call.1']
    #allocation14 [shape = 'u8[1024]{0}', space=vmem, size = 0x400, scoped, tag = 'input window, operand 6, single buffered']
    #allocation15 [shape = 'u8[512]{0}', space=vmem, size = 0x400, scoped, tag = 'input window, operand 7, single buffered']
    #allocation16 [shape = 's32[1]{0}', space=sflag, size = 0x4, scoped, tag = 'scoped memory for tpu_custom_call.1']
    #allocation17 [shape = 'u8[512]{0}', space=vmem, size = 0x400, scoped, tag = 'input window, operand 8, single buffered']
    #allocation18 [shape = 'u8[65536]{0}', space=vmem, size = 0x10000, scoped, tag = 'input window, operand 10, single buffered']
    #allocation19 [shape = 's32[1]{0}', space=sflag, size = 0x4, scoped, tag = 'scoped memory for tpu_custom_call.1']
    #allocation20 [shape = 'u8[512]{0}', space=vmem, size = 0x400, scoped, tag = 'input window, operand 11, single buffered']
    #allocation21 [shape = 'u8[1024]{0}', space=vmem, size = 0x400, scoped, tag = 'output window, operand 0']
    #allocation22 [shape = 'u8[4096]{0}', space=vmem, size = 0x1000, scoped, tag = 'output window, operand 1']
    #allocation23 [shape = 's32[2]{0}', space=sflag, size = 0x8, scoped, tag = 'scoped memory for tpu_custom_call.1']
    %21 = vsyncpa [#allocation4], 0
    %s22 = scalar_lea.sflag [#allocation4], 1
    %23 = vsyncpa %s22, 0
    %24 = vsyncpa [#allocation7], 0
    %s25 = scalar_lea.sflag [#allocation7], 1
    %26 = vsyncpa %s25, 0
    %27 = vsyncpa [#allocation10], 0
    %28 = vsyncpa [#allocation13], 0
    %29 = vsyncpa [#allocation16], 0
    %30 = vsyncpa [#allocation19], 0
    %31 = vsyncpa [#allocation5], 0
    %s32 = scalar_lea.sflag [#allocation5], 1
    %33 = vsyncpa %s32, 0
    %34 = vsyncpa [#allocation23], 0
    %s35 = scalar_lea.sflag [#allocation23], 1
    %36 = vsyncpa %s35, 0
    loop: start=0, step=1, limit=4
    $region2: #{tpu_custom_call.1} parent=1 // loop_pre_header
      _
    $region3: #{tpu_custom_call.1} parent=1 // loop_header
      %s38 = sphi 0, %s42
      %p39 = scmp.ge.s32.totalorder %s38, 4
      %s48 = sphi 0, %s50
      %s51 = sphi 0, %s48
      %s52 = sphi 0, %s51
      %s68 = sphi 0, %s52
      %s74 = sphi 0, %s76
      %s77 = sphi 0, %s74
      %s78 = sphi 0, %s77
      %s94 = sphi 0, %s78
      %s98 = sphi 0, %s98
      %s100 = sphi 0, %s98
      %s101 = sphi 0, %s100
      %s115 = sphi 0, %s101
      %s119 = sphi 0, %s119
      %s121 = sphi 0, %s119
      %s122 = sphi 0, %s121
      %s136 = sphi 0, %s122
      %s140 = sphi 0, %s140
      %s142 = sphi 0, %s140
      %s143 = sphi 0, %s142
      %s157 = sphi 0, %s143
      %s161 = sphi 0, %s161
      %s163 = sphi 0, %s161
      %s164 = sphi 0, %s163
      %s178 = sphi 0, %s164
      %s182 = sphi 0, %s182
      %s184 = sphi 0, %s182
      %s185 = sphi 0, %s184
      %s199 = sphi 0, %s185
      %s203 = sphi 0, %s203
      %s205 = sphi 0, %s203
      %s206 = sphi 0, %s205
      %s220 = sphi 0, %s206
      %s224 = sphi 0, %s224
      %s226 = sphi 0, %s224
      %s227 = sphi 0, %s226
      %s241 = sphi 0, %s227
      %s245 = sphi 0, %s245
      %s247 = sphi 0, %s245
      %s248 = sphi 0, %s247
      %s262 = sphi 0, %s248
      %s266 = sphi 0, %s266
      %s268 = sphi 0, %s266
      %s269 = sphi 0, %s268
      %s283 = sphi 0, %s269
      %s287 = sphi 0, %s287
      %s289 = sphi 0, %s287
      %s290 = sphi 0, %s289
      %s304 = sphi 0, %s290
      %s310 = sphi 0, %s312
      %s313 = sphi 0, %s310
      %s314 = sphi 0, %s313
      %s330 = sphi 0, %s314
      %s336 = sphi 0, %s338
      %s339 = sphi 0, %s336
      %s340 = sphi 0, %s339
      %s356 = sphi 0, %s340
    $region4: #{tpu_custom_call.1} parent=1 // loop_header_branch
      %41 = sbr.rel (%p39) target = $region8
    $region5: #{tpu_custom_call.1} parent=1 // loop_body
      %s43 = ssub.s32 %s38, 1
      %s44 = ssub.s32 %s38, 2
      %s45 = sadd.s32 %s38, 1
      %s46 = ssub.s32 %s38, %s45
      %p47 = scmp.eq.s32.totalorder %s46, 0
      %s49 = sadd.s32 %s48, 1
      %s50 = scalar_select %p47, %s48, %s49
      %p53 = pneg %p47
      %p54 = scmp.eq.s32.totalorder %s38, 1
      %p55 = por %p53, %p54
      %p56 = scmp.ne.s32.totalorder %s48, %s51
      %p57 = scmp.eq.s32.totalorder %s38, 0
      %p58 = por %p56, %p57
      %p59 = scmp.ne.s32.totalorder %s48, %s51
      %p60 = scmp.eq.s32.totalorder %s43, 1
      %p61 = por %p59, %p60
      %p62 = scmp.ne.s32.totalorder %s51, %s52
      %p63 = scmp.eq.s32.totalorder %s43, 0
      %p64 = por %p62, %p63
      %p65 = scmp.ne.s32.totalorder %s51, %s52
      %p66 = scmp.eq.s32.totalorder %s44, 1
      %p67 = por %p65, %p66
      %p69 = scmp.ne.s32.totalorder %s52, %s68
      %p70 = scmp.eq.s32.totalorder %s44, 0
      %p71 = por %p69, %p70
      %s72 = ssub.s32 %s38, %s45
      %p73 = scmp.eq.s32.totalorder %s72, 0
      %s75 = sadd.s32 %s74, 1
      %s76 = scalar_select %p73, %s74, %s75
      %p79 = pneg %p73
      %p80 = scmp.eq.s32.totalorder %s38, 1
      %p81 = por %p79, %p80
      %p82 = scmp.ne.s32.totalorder %s74, %s77
      %p83 = scmp.eq.s32.totalorder %s38, 0
      %p84 = por %p82, %p83
      %p85 = scmp.ne.s32.totalorder %s74, %s77
      %p86 = scmp.eq.s32.totalorder %s43, 1
      %p87 = por %p85, %p86
      %p88 = scmp.ne.s32.totalorder %s77, %s78
      %p89 = scmp.eq.s32.totalorder %s43, 0
      %p90 = por %p88, %p89
      %p91 = scmp.ne.s32.totalorder %s77, %s78
      %p92 = scmp.eq.s32.totalorder %s44, 1
      %p93 = por %p91, %p92
      %p95 = scmp.ne.s32.totalorder %s78, %s94
      %p96 = scmp.eq.s32.totalorder %s44, 0
      %p97 = por %p95, %p96
      %s99 = sadd.s32 %s98, 1
      %p102 = scmp.eq.s32.totalorder %s38, 1
      %p103 = scmp.ne.s32.totalorder %s98, %s100
      %p104 = scmp.eq.s32.totalorder %s38, 0
      %p105 = por %p103, %p104
      %p106 = scmp.ne.s32.totalorder %s98, %s100
      %p107 = scmp.eq.s32.totalorder %s43, 1
      %p108 = por %p106, %p107
      %p109 = scmp.ne.s32.totalorder %s100, %s101
      %p110 = scmp.eq.s32.totalorder %s43, 0
      %p111 = por %p109, %p110
      %p112 = scmp.ne.s32.totalorder %s100, %s101
      %p113 = scmp.eq.s32.totalorder %s44, 1
      %p114 = por %p112, %p113
      %p116 = scmp.ne.s32.totalorder %s101, %s115
      %p117 = scmp.eq.s32.totalorder %s44, 0
      %p118 = por %p116, %p117
      %s120 = sadd.s32 %s119, 1
      %p123 = scmp.eq.s32.totalorder %s38, 1
      %p124 = scmp.ne.s32.totalorder %s119, %s121
      %p125 = scmp.eq.s32.totalorder %s38, 0
      %p126 = por %p124, %p125
      %p127 = scmp.ne.s32.totalorder %s119, %s121
      %p128 = scmp.eq.s32.totalorder %s43, 1
      %p129 = por %p127, %p128
      %p130 = scmp.ne.s32.totalorder %s121, %s122
      %p131 = scmp.eq.s32.totalorder %s43, 0
      %p132 = por %p130, %p131
      %p133 = scmp.ne.s32.totalorder %s121, %s122
      %p134 = scmp.eq.s32.totalorder %s44, 1
      %p135 = por %p133, %p134
      %p137 = scmp.ne.s32.totalorder %s122, %s136
      %p138 = scmp.eq.s32.totalorder %s44, 0
      %p139 = por %p137, %p138
      %s141 = sadd.s32 %s140, 1
      %p144 = scmp.eq.s32.totalorder %s38, 1
      %p145 = scmp.ne.s32.totalorder %s140, %s142
      %p146 = scmp.eq.s32.totalorder %s38, 0
      %p147 = por %p145, %p146
      %p148 = scmp.ne.s32.totalorder %s140, %s142
      %p149 = scmp.eq.s32.totalorder %s43, 1
      %p150 = por %p148, %p149
      %p151 = scmp.ne.s32.totalorder %s142, %s143
      %p152 = scmp.eq.s32.totalorder %s43, 0
      %p153 = por %p151, %p152
      %p154 = scmp.ne.s32.totalorder %s142, %s143
      %p155 = scmp.eq.s32.totalorder %s44, 1
      %p156 = por %p154, %p155
      %p158 = scmp.ne.s32.totalorder %s143, %s157
      %p159 = scmp.eq.s32.totalorder %s44, 0
      %p160 = por %p158, %p159
      %s162 = sadd.s32 %s161, 1
      %p165 = scmp.eq.s32.totalorder %s38, 1
      %p166 = scmp.ne.s32.totalorder %s161, %s163
      %p167 = scmp.eq.s32.totalorder %s38, 0
      %p168 = por %p166, %p167
      %p169 = scmp.ne.s32.totalorder %s161, %s163
      %p170 = scmp.eq.s32.totalorder %s43, 1
      %p171 = por %p169, %p170
      %p172 = scmp.ne.s32.totalorder %s163, %s164
      %p173 = scmp.eq.s32.totalorder %s43, 0
      %p174 = por %p172, %p173
      %p175 = scmp.ne.s32.totalorder %s163, %s164
      %p176 = scmp.eq.s32.totalorder %s44, 1
      %p177 = por %p175, %p176
      %p179 = scmp.ne.s32.totalorder %s164, %s178
      %p180 = scmp.eq.s32.totalorder %s44, 0
      %p181 = por %p179, %p180
      %s183 = sadd.s32 %s182, 1
      %p186 = scmp.eq.s32.totalorder %s38, 1
      %p187 = scmp.ne.s32.totalorder %s182, %s184
      %p188 = scmp.eq.s32.totalorder %s38, 0
      %p189 = por %p187, %p188
      %p190 = scmp.ne.s32.totalorder %s182, %s184
      %p191 = scmp.eq.s32.totalorder %s43, 1
      %p192 = por %p190, %p191
      %p193 = scmp.ne.s32.totalorder %s184, %s185
      %p194 = scmp.eq.s32.totalorder %s43, 0
      %p195 = por %p193, %p194
      %p196 = scmp.ne.s32.totalorder %s184, %s185
      %p197 = scmp.eq.s32.totalorder %s44, 1
      %p198 = por %p196, %p197
      %p200 = scmp.ne.s32.totalorder %s185, %s199
      %p201 = scmp.eq.s32.totalorder %s44, 0
      %p202 = por %p200, %p201
      %s204 = sadd.s32 %s203, 1
      %p207 = scmp.eq.s32.totalorder %s38, 1
      %p208 = scmp.ne.s32.totalorder %s203, %s205
      %p209 = scmp.eq.s32.totalorder %s38, 0
      %p210 = por %p208, %p209
      %p211 = scmp.ne.s32.totalorder %s203, %s205
      %p212 = scmp.eq.s32.totalorder %s43, 1
      %p213 = por %p211, %p212
      %p214 = scmp.ne.s32.totalorder %s205, %s206
      %p215 = scmp.eq.s32.totalorder %s43, 0
      %p216 = por %p214, %p215
      %p217 = scmp.ne.s32.totalorder %s205, %s206
      %p218 = scmp.eq.s32.totalorder %s44, 1
      %p219 = por %p217, %p218
      %p221 = scmp.ne.s32.totalorder %s206, %s220
      %p222 = scmp.eq.s32.totalorder %s44, 0
      %p223 = por %p221, %p222
      %s225 = sadd.s32 %s224, 1
      %p228 = scmp.eq.s32.totalorder %s38, 1
      %p229 = scmp.ne.s32.totalorder %s224, %s226
      %p230 = scmp.eq.s32.totalorder %s38, 0
      %p231 = por %p229, %p230
      %p232 = scmp.ne.s32.totalorder %s224, %s226
      %p233 = scmp.eq.s32.totalorder %s43, 1
      %p234 = por %p232, %p233
      %p235 = scmp.ne.s32.totalorder %s226, %s227
      %p236 = scmp.eq.s32.totalorder %s43, 0
      %p237 = por %p235, %p236
      %p238 = scmp.ne.s32.totalorder %s226, %s227
      %p239 = scmp.eq.s32.totalorder %s44, 1
      %p240 = por %p238, %p239
      %p242 = scmp.ne.s32.totalorder %s227, %s241
      %p243 = scmp.eq.s32.totalorder %s44, 0
      %p244 = por %p242, %p243
      %s246 = sadd.s32 %s245, 1
      %p249 = scmp.eq.s32.totalorder %s38, 1
      %p250 = scmp.ne.s32.totalorder %s245, %s247
      %p251 = scmp.eq.s32.totalorder %s38, 0
      %p252 = por %p250, %p251
      %p253 = scmp.ne.s32.totalorder %s245, %s247
      %p254 = scmp.eq.s32.totalorder %s43, 1
      %p255 = por %p253, %p254
      %p256 = scmp.ne.s32.totalorder %s247, %s248
      %p257 = scmp.eq.s32.totalorder %s43, 0
      %p258 = por %p256, %p257
      %p259 = scmp.ne.s32.totalorder %s247, %s248
      %p260 = scmp.eq.s32.totalorder %s44, 1
      %p261 = por %p259, %p260
      %p263 = scmp.ne.s32.totalorder %s248, %s262
      %p264 = scmp.eq.s32.totalorder %s44, 0
      %p265 = por %p263, %p264
      %s267 = sadd.s32 %s266, 1
      %p270 = scmp.eq.s32.totalorder %s38, 1
      %p271 = scmp.ne.s32.totalorder %s266, %s268
      %p272 = scmp.eq.s32.totalorder %s38, 0
      %p273 = por %p271, %p272
      %p274 = scmp.ne.s32.totalorder %s266, %s268
      %p275 = scmp.eq.s32.totalorder %s43, 1
      %p276 = por %p274, %p275
      %p277 = scmp.ne.s32.totalorder %s268, %s269
      %p278 = scmp.eq.s32.totalorder %s43, 0
      %p279 = por %p277, %p278
      %p280 = scmp.ne.s32.totalorder %s268, %s269
      %p281 = scmp.eq.s32.totalorder %s44, 1
      %p282 = por %p280, %p281
      %p284 = scmp.ne.s32.totalorder %s269, %s283
      %p285 = scmp.eq.s32.totalorder %s44, 0
      %p286 = por %p284, %p285
      %s288 = sadd.s32 %s287, 1
      %p291 = scmp.eq.s32.totalorder %s38, 1
      %p292 = scmp.ne.s32.totalorder %s287, %s289
      %p293 = scmp.eq.s32.totalorder %s38, 0
      %p294 = por %p292, %p293
      %p295 = scmp.ne.s32.totalorder %s287, %s289
      %p296 = scmp.eq.s32.totalorder %s43, 1
      %p297 = por %p295, %p296
      %p298 = scmp.ne.s32.totalorder %s289, %s290
      %p299 = scmp.eq.s32.totalorder %s43, 0
      %p300 = por %p298, %p299
      %p301 = scmp.ne.s32.totalorder %s289, %s290
      %p302 = scmp.eq.s32.totalorder %s44, 1
      %p303 = por %p301, %p302
      %p305 = scmp.ne.s32.totalorder %s290, %s304
      %p306 = scmp.eq.s32.totalorder %s44, 0
      %p307 = por %p305, %p306
      %s308 = ssub.s32 %s38, %s45
      %p309 = scmp.eq.s32.totalorder %s308, 0
      %s311 = sadd.s32 %s310, 1
      %s312 = scalar_select %p309, %s310, %s311
      %p315 = pneg %p309
      %p316 = scmp.eq.s32.totalorder %s38, 1
      %p317 = por %p315, %p316
      %p318 = scmp.ne.s32.totalorder %s310, %s313
      %p319 = scmp.eq.s32.totalorder %s38, 0
      %p320 = por %p318, %p319
      %p321 = scmp.ne.s32.totalorder %s310, %s313
      %p322 = scmp.eq.s32.totalorder %s43, 1
      %p323 = por %p321, %p322
      %p324 = scmp.ne.s32.totalorder %s313, %s314
      %p325 = scmp.eq.s32.totalorder %s43, 0
      %p326 = por %p324, %p325
      %p327 = scmp.ne.s32.totalorder %s313, %s314
      %p328 = scmp.eq.s32.totalorder %s44, 1
      %p329 = por %p327, %p328
      %p331 = scmp.ne.s32.totalorder %s314, %s330
      %p332 = scmp.eq.s32.totalorder %s44, 0
      %p333 = por %p331, %p332
      %s334 = ssub.s32 %s38, %s45
      %p335 = scmp.eq.s32.totalorder %s334, 0
      %s337 = sadd.s32 %s336, 1
      %s338 = scalar_select %p335, %s336, %s337
      %p341 = pneg %p335
      %p342 = scmp.eq.s32.totalorder %s38, 1
      %p343 = por %p341, %p342
      %p344 = scmp.ne.s32.totalorder %s336, %s339
      %p345 = scmp.eq.s32.totalorder %s38, 0
      %p346 = por %p344, %p345
      %p347 = scmp.ne.s32.totalorder %s336, %s339
      %p348 = scmp.eq.s32.totalorder %s43, 1
      %p349 = por %p347, %p348
      %p350 = scmp.ne.s32.totalorder %s339, %s340
      %p351 = scmp.eq.s32.totalorder %s43, 0
      %p352 = por %p350, %p351
      %p353 = scmp.ne.s32.totalorder %s339, %s340
      %p354 = scmp.eq.s32.totalorder %s44, 1
      %p355 = por %p353, %p354
      %p357 = scmp.ne.s32.totalorder %s340, %s356
      %p358 = scmp.eq.s32.totalorder %s44, 0
      %p359 = por %p357, %p358
      %p360 = scmp.le.s32.totalorder 1, %s38
      %p361 = scmp.lt.s32.totalorder %s38, 3
      %p362 = pnand %p360, %p361
      %p363 = pneg %p362
      // Predicated region
      $region9: #{tpu_custom_call.1} parent=5 // pred_check
        _
      $region10: #{tpu_custom_call.1} parent=5 // pred_check_branch
        %365 = sbr.rel (%p362) target = $region12
      $region11: #{tpu_custom_call.1} parent=5 // pred_region
        %s366 = ssub.s32 %s38, 1
        // Predicated region
        $region13: #{tpu_custom_call.1} parent=11 // pred_check
          %p367 = pneg %p111
        $region14: #{tpu_custom_call.1} parent=11 // pred_check_branch
          %369 = sbr.rel (%p367) target = $region16
        $region15: #{tpu_custom_call.1} parent=11 // pred_region
          %s371 = ssub.s32 1024, 1024
          %372 = vsyncadd [#allocation7], %s371
          %s373 = sshll.u32 [#allocation8], 4
          %s374 = int_to_ptr.vmem [resolvable:$true] %s373
          %379 = dma.hbm_to_vmem [thread:$0]  %s2, 1024, %s374, [#allocation7], 64, 64, 4
        $region16: #{tpu_custom_call.1} parent=11 // pred_fallthru
          _
        // Predicated region
        $region17: #{tpu_custom_call.1} parent=11 // pred_check
          %p380 = pneg %p132
        $region18: #{tpu_custom_call.1} parent=11 // pred_check_branch
          %382 = sbr.rel (%p380) target = $region20
        $region19: #{tpu_custom_call.1} parent=11 // pred_region
          %s384 = ssub.s32 16, 16
          %385 = vsyncadd [#allocation10], %s384
          %s387 = sshll.u32 [#allocation9], 4
          %s388 = int_to_ptr.vmem [resolvable:$true] %s387
          %390 = dma.hbm_to_vmem [thread:$0]  %s3, 16, %s388, [#allocation10]
        $region20: #{tpu_custom_call.1} parent=11 // pred_fallthru
          _
        // Predicated region
        $region21: #{tpu_custom_call.1} parent=11 // pred_check
          %p391 = pneg %p153
        $region22: #{tpu_custom_call.1} parent=11 // pred_check_branch
          %393 = sbr.rel (%p391) target = $region24
        $region23: #{tpu_custom_call.1} parent=11 // pred_region
          %s395 = ssub.s32 1024, 1024
          %396 = vsyncadd [#allocation10], %s395
          %s397 = sshll.u32 [#allocation11], 4
          %s398 = int_to_ptr.vmem [resolvable:$true] %s397
          %403 = dma.hbm_to_vmem [thread:$0]  %s4, 1024, %s398, [#allocation10], 64, 64, 4
        $region24: #{tpu_custom_call.1} parent=11 // pred_fallthru
          _
        // Predicated region
        $region25: #{tpu_custom_call.1} parent=11 // pred_check
          %p404 = pneg %p174
        $region26: #{tpu_custom_call.1} parent=11 // pred_check_branch
          %406 = sbr.rel (%p404) target = $region28
        $region27: #{tpu_custom_call.1} parent=11 // pred_region
          %s408 = ssub.s32 16, 16
          %409 = vsyncadd [#allocation13], %s408
          %s411 = sshll.u32 [#allocation12], 4
          %s412 = int_to_ptr.vmem [resolvable:$true] %s411
          %414 = dma.hbm_to_vmem [thread:$0]  %s5, 16, %s412, [#allocation13]
        $region28: #{tpu_custom_call.1} parent=11 // pred_fallthru
          _
        // Predicated region
        $region29: #{tpu_custom_call.1} parent=11 // pred_check
          %p415 = pneg %p195
        $region30: #{tpu_custom_call.1} parent=11 // pred_check_branch
          %417 = sbr.rel (%p415) target = $region32
        $region31: #{tpu_custom_call.1} parent=11 // pred_region
          %s419 = ssub.s32 32, 32
          %420 = vsyncadd [#allocation13], %s419
          %s422 = sshll.u32 [#allocation14], 4
          %s423 = int_to_ptr.vmem [resolvable:$true] %s422
          %425 = dma.hbm_to_vmem [thread:$0]  %s6, 32, %s423, [#allocation13]
        $region32: #{tpu_custom_call.1} parent=11 // pred_fallthru
          _
        // Predicated region
        $region33: #{tpu_custom_call.1} parent=11 // pred_check
          %p426 = pneg %p216
        $region34: #{tpu_custom_call.1} parent=11 // pred_check_branch
          %428 = sbr.rel (%p426) target = $region36
        $region35: #{tpu_custom_call.1} parent=11 // pred_region
          %s430 = ssub.s32 16, 16
          %431 = vsyncadd [#allocation16], %s430
          %s433 = sshll.u32 [#allocation15], 4
          %s434 = int_to_ptr.vmem [resolvable:$true] %s433
          %436 = dma.hbm_to_vmem [thread:$0]  %s7, 16, %s434, [#allocation16]
        $region36: #{tpu_custom_call.1} parent=11 // pred_fallthru
          _
        // Predicated region
        $region37: #{tpu_custom_call.1} parent=11 // pred_check
          %p437 = pneg %p237
        $region38: #{tpu_custom_call.1} parent=11 // pred_check_branch
          %439 = sbr.rel (%p437) target = $region40
        $region39: #{tpu_custom_call.1} parent=11 // pred_region
          %s441 = ssub.s32 16, 16
          %442 = vsyncadd [#allocation16], %s441
          %s444 = sshll.u32 [#allocation17], 4
          %s445 = int_to_ptr.vmem [resolvable:$true] %s444
          %447 = dma.hbm_to_vmem [thread:$0]  %s8, 16, %s445, [#allocation16]
        $region40: #{tpu_custom_call.1} parent=11 // pred_fallthru
          _
        // Predicated region
        $region41: #{tpu_custom_call.1} parent=11 // pred_check
          %p448 = pneg %p258
        $region42: #{tpu_custom_call.1} parent=11 // pred_check_branch
          %450 = sbr.rel (%p448) target = $region44
        $region43: #{tpu_custom_call.1} parent=11 // pred_region
          _
        $region44: #{tpu_custom_call.1} parent=11 // pred_fallthru
          _
        // Predicated region
        $region45: #{tpu_custom_call.1} parent=11 // pred_check
          %p451 = pneg %p279
        $region46: #{tpu_custom_call.1} parent=11 // pred_check_branch
          %453 = sbr.rel (%p451) target = $region48
        $region47: #{tpu_custom_call.1} parent=11 // pred_region
          %s455 = ssub.s32 2048, 2048
          %456 = vsyncadd [#allocation19], %s455
          %s457 = sshll.u32 [#allocation18], 4
          %s458 = int_to_ptr.vmem [resolvable:$true] %s457
          %463 = dma.hbm_to_vmem [thread:$0]  %s10, 2048, %s458, [#allocation19], 128, 128, 8
        $region48: #{tpu_custom_call.1} parent=11 // pred_fallthru
          _
        // Predicated region
        $region49: #{tpu_custom_call.1} parent=11 // pred_check
          %p464 = pneg %p300
        $region50: #{tpu_custom_call.1} parent=11 // pred_check_branch
          %466 = sbr.rel (%p464) target = $region52
        $region51: #{tpu_custom_call.1} parent=11 // pred_region
          %s468 = ssub.s32 16, 16
          %469 = vsyncadd [#allocation19], %s468
          %s471 = sshll.u32 [#allocation20], 4
          %s472 = int_to_ptr.vmem [resolvable:$true] %s471
          %474 = dma.hbm_to_vmem [thread:$0]  %s11, 16, %s472, [#allocation19]
        $region52: #{tpu_custom_call.1} parent=11 // pred_fallthru
          _
      $region12: #{tpu_custom_call.1} parent=5 // pred_fallthru
        _
      %p475 = scmp.lt.s32.totalorder %s38, 2
      // Predicated region
      $region53: #{tpu_custom_call.1} parent=5 // pred_check
        %p476 = pneg %p475
      $region54: #{tpu_custom_call.1} parent=5 // pred_check_branch
        %478 = sbr.rel (%p476) target = $region56
      $region55: #{tpu_custom_call.1} parent=5 // pred_region
        // Predicated region
        $region57: #{tpu_custom_call.1} parent=55 // pred_check
          %p479 = pneg %p58
        $region58: #{tpu_custom_call.1} parent=55 // pred_check_branch
          %481 = sbr.rel (%p479) target = $region60
        $region59: #{tpu_custom_call.1} parent=55 // pred_region
          %s482 = sand.u32 %s48, 1
          %s483 = scalar_lea.sflag [#allocation4], %s482
          %s484 = sand.u32 %s48, 1
          %s485 = smul.addr %s484, 16
          %s486 = scalar_lea.vmem [#allocation3], %s485
          %s488 = ssub.s32 256, 256
          %489 = vsyncadd %s483, %s488
          %s490 = smul.addr %s38, 2
          %s491 = smul.addr %s490, 128
          %s492 = scalar_lea.hbm %s0, %s491
          %s493 = sshll.u32 %s486, 4
          %s494 = int_to_ptr.vmem [resolvable:$true] %s493
          %499 = dma.hbm_to_vmem [thread:$0]  %s492, 256, %s494, %s483, 128, 128, 8
        $region60: #{tpu_custom_call.1} parent=55 // pred_fallthru
          _
        // Predicated region
        $region61: #{tpu_custom_call.1} parent=55 // pred_check
          %p500 = pneg %p84
        $region62: #{tpu_custom_call.1} parent=55 // pred_check_branch
          %502 = sbr.rel (%p500) target = $region64
        $region63: #{tpu_custom_call.1} parent=55 // pred_region
          %s503 = sand.u32 %s38, 1
          %s504 = scalar_lea.sflag [#allocation7], %s503
          %s505 = sand.u32 %s74, 1
          %s506 = smul.addr %s505, 8
          %s507 = scalar_lea.vmem [#allocation6], %s506
          %s509 = ssub.s32 128, 128
          %510 = vsyncadd %s504, %s509
          %s511 = smul.addr %s38, 128
          %s512 = scalar_lea.hbm %s1, %s511
          %s514 = sshll.u32 %s507, 4
          %s515 = int_to_ptr.vmem [resolvable:$true] %s514
          %517 = dma.hbm_to_vmem [thread:$0]  %s512, 128, %s515, %s504
        $region64: #{tpu_custom_call.1} parent=55 // pred_fallthru
          _
      $region56: #{tpu_custom_call.1} parent=5 // pred_fallthru
        _
      %p518 = scmp.le.s32.totalorder 1, %s38
      %p519 = scmp.lt.s32.totalorder %s38, 3
      %p520 = pnand %p518, %p519
      %p521 = pneg %p520
      // Predicated region
      $region65: #{tpu_custom_call.1} parent=5 // pred_check
        _
      $region66: #{tpu_custom_call.1} parent=5 // pred_check_branch
        %523 = sbr.rel (%p520) target = $region68
      $region67: #{tpu_custom_call.1} parent=5 // pred_region
        %s524 = ssub.s32 %s38, 1
        %s525 = sand.u32 %s51, 1
        %s526 = scalar_lea.sflag [#allocation4], %s525
        %s527 = sand.u32 %s51, 1
        %s528 = smul.addr %s527, 16
        %s529 = scalar_lea.vmem [#allocation3], %s528
        // Predicated region
        $region69: #{tpu_custom_call.1} parent=67 // pred_check
          %p530 = pneg %p64
        $region70: #{tpu_custom_call.1} parent=67 // pred_check_branch
          %532 = sbr.rel (%p530) target = $region72
        $region71: #{tpu_custom_call.1} parent=67 // pred_region
          %533 = dma.done %s526, 256
        $region72: #{tpu_custom_call.1} parent=67 // pred_fallthru
          _
        %s534 = sand.u32 %s43, 1
        %s535 = scalar_lea.sflag [#allocation7], %s534
        %s536 = sand.u32 %s77, 1
        %s537 = smul.addr %s536, 8
        %s538 = scalar_lea.vmem [#allocation6], %s537
        // Predicated region
        $region73: #{tpu_custom_call.1} parent=67 // pred_check
          %p539 = pneg %p90
        $region74: #{tpu_custom_call.1} parent=67 // pred_check_branch
          %541 = sbr.rel (%p539) target = $region76
        $region75: #{tpu_custom_call.1} parent=67 // pred_region
          %542 = dma.done %s535, 128
        $region76: #{tpu_custom_call.1} parent=67 // pred_fallthru
          _
        // Predicated region
        $region77: #{tpu_custom_call.1} parent=67 // pred_check
          %p543 = pneg %p111
        $region78: #{tpu_custom_call.1} parent=67 // pred_check_branch
          %545 = sbr.rel (%p543) target = $region80
        $region79: #{tpu_custom_call.1} parent=67 // pred_region
          %546 = dma.done [#allocation7], 1024
        $region80: #{tpu_custom_call.1} parent=67 // pred_fallthru
          _
        // Predicated region
        $region81: #{tpu_custom_call.1} parent=67 // pred_check
          %p547 = pneg %p132
        $region82: #{tpu_custom_call.1} parent=67 // pred_check_branch
          %549 = sbr.rel (%p547) target = $region84
        $region83: #{tpu_custom_call.1} parent=67 // pred_region
          %550 = dma.done [#allocation10], 16
        $region84: #{tpu_custom_call.1} parent=67 // pred_fallthru
          _
        // Predicated region
        $region85: #{tpu_custom_call.1} parent=67 // pred_check
          %p551 = pneg %p153
        $region86: #{tpu_custom_call.1} parent=67 // pred_check_branch
          %553 = sbr.rel (%p551) target = $region88
        $region87: #{tpu_custom_call.1} parent=67 // pred_region
          %554 = dma.done [#allocation10], 1024
        $region88: #{tpu_custom_call.1} parent=67 // pred_fallthru
          _
        // Predicated region
        $region89: #{tpu_custom_call.1} parent=67 // pred_check
          %p555 = pneg %p174
        $region90: #{tpu_custom_call.1} parent=67 // pred_check_branch
          %557 = sbr.rel (%p555) target = $region92
        $region91: #{tpu_custom_call.1} parent=67 // pred_region
          %558 = dma.done [#allocation13], 16
        $region92: #{tpu_custom_call.1} parent=67 // pred_fallthru
          _
        // Predicated region
        $region93: #{tpu_custom_call.1} parent=67 // pred_check
          %p559 = pneg %p195
        $region94: #{tpu_custom_call.1} parent=67 // pred_check_branch
          %561 = sbr.rel (%p559) target = $region96
        $region95: #{tpu_custom_call.1} parent=67 // pred_region
          %562 = dma.done [#allocation13], 32
        $region96: #{tpu_custom_call.1} parent=67 // pred_fallthru
          _
        // Predicated region
        $region97: #{tpu_custom_call.1} parent=67 // pred_check
          %p563 = pneg %p216
        $region98: #{tpu_custom_call.1} parent=67 // pred_check_branch
          %565 = sbr.rel (%p563) target = $region100
        $region99: #{tpu_custom_call.1} parent=67 // pred_region
          %566 = dma.done [#allocation16], 16
        $region100: #{tpu_custom_call.1} parent=67 // pred_fallthru
          _
        // Predicated region
        $region101: #{tpu_custom_call.1} parent=67 // pred_check
          %p567 = pneg %p237
        $region102: #{tpu_custom_call.1} parent=67 // pred_check_branch
          %569 = sbr.rel (%p567) target = $region104
        $region103: #{tpu_custom_call.1} parent=67 // pred_region
          %570 = dma.done [#allocation16], 16
        $region104: #{tpu_custom_call.1} parent=67 // pred_fallthru
          _
        // Predicated region
        $region105: #{tpu_custom_call.1} parent=67 // pred_check
          %p571 = pneg %p279
        $region106: #{tpu_custom_call.1} parent=67 // pred_check_branch
          %573 = sbr.rel (%p571) target = $region108
        $region107: #{tpu_custom_call.1} parent=67 // pred_region
          %574 = dma.done [#allocation19], 2048
        $region108: #{tpu_custom_call.1} parent=67 // pred_fallthru
          _
        // Predicated region
        $region109: #{tpu_custom_call.1} parent=67 // pred_check
          %p575 = pneg %p300
        $region110: #{tpu_custom_call.1} parent=67 // pred_check_branch
          %577 = sbr.rel (%p575) target = $region112
        $region111: #{tpu_custom_call.1} parent=67 // pred_region
          %578 = dma.done [#allocation19], 16
        $region112: #{tpu_custom_call.1} parent=67 // pred_fallthru
          _
        %s579 = sand.u32 %s51, 1
        %s580 = scalar_lea.sflag [#allocation4], %s579
        %s581 = sand.u32 %s51, 1
        %s582 = smul.addr %s581, 16
        %s583 = scalar_lea.vmem [#allocation3], %s582
        %p584 = pneg %p64
        %p585 = pneg %p61
        %s586 = sand.u32 %s43, 1
        %s587 = scalar_lea.sflag [#allocation7], %s586
        %s588 = sand.u32 %s77, 1
        %s589 = smul.addr %s588, 8
        %s590 = scalar_lea.vmem [#allocation6], %s589
        %p591 = pneg %p90
        %p592 = pneg %p87
        %p593 = pneg %p111
        %p594 = pneg %p108
        %p595 = pneg %p132
        %p596 = pneg %p129
        %p597 = pneg %p153
        %p598 = pneg %p150
        %p599 = pneg %p174
        %p600 = pneg %p171
        %p601 = pneg %p195
        %p602 = pneg %p192
        %p603 = pneg %p216
        %p604 = pneg %p213
        %p605 = pneg %p237
        %p606 = pneg %p234
        %p607 = pneg %p258
        %p608 = pneg %p255
        %p609 = pneg %p279
        %p610 = pneg %p276
        %p611 = pneg %p300
        %p612 = pneg %p297
        %p613 = pneg %p326
        %p614 = pneg %p323
        %s615 = sand.u32 %s313, 1
        %s616 = scalar_lea.sflag [#allocation5], %s615
        %s617 = sand.u32 %s313, 1
        %s618 = scalar_lea.vmem [#allocation21], %s617
        %p619 = pneg %p352
        %p620 = pneg %p349
        %s621 = sand.u32 %s339, 1
        %s622 = scalar_lea.sflag [#allocation23], %s621
        %s623 = sand.u32 %s339, 1
        %s624 = smul.addr %s623, 4
        %s625 = scalar_lea.vmem [#allocation22], %s624
        %v627 = vld [vmem:[%s529] sm:$0xff]
        %v628 = vld [vmem:[%s529 + $0x8] sm:$0xff]
        %v629 = vpack.c.bf16 %v628, %v627
        %v630 = vld [vmem:[%s538] sm:$0xff]
        %v631 = vpack.c.bf16 %v630, %v630
        %v632 = vld [vmem:[#allocation8] sm:$0xf]
        %v633 = vld [vmem:[#allocation8 + $0x4] sm:$0xf]
        %v634 = vld [vmem:[#allocation8 + $0x8] sm:$0xf]
        %v635 = vld [vmem:[#allocation8 + $0xc] sm:$0xf]
        %v636 = vld [vmem:[#allocation8 + $0x10] sm:$0xf]
        %v637 = vld [vmem:[#allocation8 + $0x14] sm:$0xf]
        %v638 = vld [vmem:[#allocation8 + $0x18] sm:$0xf]
        %v639 = vld [vmem:[#allocation8 + $0x1c] sm:$0xf]
        %v640 = vld [vmem:[#allocation8 + $0x20] sm:$0xf]
        %v641 = vld [vmem:[#allocation8 + $0x24] sm:$0xf]
        %v642 = vld [vmem:[#allocation8 + $0x28] sm:$0xf]
        %v643 = vld [vmem:[#allocation8 + $0x2c] sm:$0xf]
        %v644 = vld [vmem:[#allocation8 + $0x30] sm:$0xf]
        %v645 = vld [vmem:[#allocation8 + $0x34] sm:$0xf]
        %v646 = vld [vmem:[#allocation8 + $0x38] sm:$0xf]
        %v647 = vld [vmem:[#allocation8 + $0x3c] sm:$0xf]
        %v648 = vld [vmem:[#allocation9] sm:$0x1]
        %v650 = vlaneseq
        %v651 = vshrl.u32 %v650, 7
        %v652 = vsub.s32 0, %v651
        %v653 = vrot.slane %v648, %v652
        %v671 = vunpack.c.l.b16 %v632
        %v672 = vunpack.c.l.b16 %v633
        %v673 = vunpack.c.l.b16 %v634
        %v674 = vunpack.c.l.b16 %v635
        %v675 = vunpack.c.l.b16 %v636
        %v676 = vunpack.c.l.b16 %v637
        %v677 = vunpack.c.l.b16 %v638
        %v678 = vunpack.c.l.b16 %v639
        %v679 = vunpack.c.l.b16 %v640
        %v680 = vunpack.c.l.b16 %v641
        %v681 = vunpack.c.l.b16 %v642
        %v682 = vunpack.c.l.b16 %v643
        %v683 = vunpack.c.l.b16 %v644
        %v684 = vunpack.c.l.b16 %v645
        %v685 = vunpack.c.l.b16 %v646
        %v686 = vunpack.c.l.b16 %v647
        %v687 = vpack.c.b16 %v672, %v671
        %v688 = vpack.c.b16 %v674, %v673
        %v689 = vpack.c.b16 %v676, %v675
        %v690 = vpack.c.b16 %v678, %v677
        %v691 = vpack.c.b16 %v680, %v679
        %v692 = vpack.c.b16 %v682, %v681
        %v693 = vpack.c.b16 %v684, %v683
        %v694 = vpack.c.b16 %v686, %v685
        %703 = vmatprep.subr.bf16.mxu0 0
        %704 = vmatpush1.bf16.msra.mxu0 %v687
        %705 = vmatprep.subr.bf16.mxu0 0
        %706 = vmatpush1.bf16.msra.mxu0 %v688
        %707 = vmatprep.subr.bf16.mxu0 0
        %708 = vmatpush1.bf16.msra.mxu0 %v689
        %709 = vmatprep.subr.bf16.mxu0 0
        %710 = vmatpush1.bf16.msra.mxu0 %v690
        %711 = vmatprep.subr.bf16.mxu0 0
        %712 = vmatpush1.bf16.msra.mxu0 %v691
        %713 = vmatprep.subr.bf16.mxu0 0
        %714 = vmatpush1.bf16.msra.mxu0 %v692
        %715 = vmatprep.subr.bf16.mxu0 0
        %716 = vmatpush1.bf16.msra.mxu0 %v693
        %717 = vmatprep.subr.bf16.mxu0 0
        %718 = vmatpush1.bf16.msra.mxu0 %v694
        %719 = vmatprep.subr.bf16.mxu0 0
        %720 = vmatpush1.bf16.msra.mxu0 0
        %721 = vmatprep.subr.bf16.mxu0 0
        %722 = vmatpush1.bf16.msra.mxu0 0
        %723 = vmatprep.subr.bf16.mxu0 0
        %724 = vmatpush1.bf16.msra.mxu0 0
        %725 = vmatprep.subr.bf16.mxu0 0
        %726 = vmatpush1.bf16.msra.mxu0 0
        %727 = vmatprep.subr.bf16.mxu0 0
        %728 = vmatpush1.bf16.msra.mxu0 0
        %729 = vmatprep.subr.bf16.mxu0 0
        %730 = vmatpush1.bf16.msra.mxu0 0
        %731 = vmatprep.subr.bf16.mxu0 0
        %732 = vmatpush1.bf16.msra.mxu0 0
        %733 = vmatprep.subr.bf16.mxu0 0
        %734 = vmatpush1.bf16.msra.mxu0 0
        %735 = vmatprep.mubr.bf16.mxu0 0
        %736 = vmatmul.mubr.bf16.gmra.mrb[0].mxu0 %v629
        %v737 = vpop.f32.mrb[0].mxu0
        %v738 = vadd.f32 %v653, %v737
        %v739 = vpop.f32.mrb[0].mxu0
        %v740 = vpop.f32.mrb[0].mxu0
        %v741 = vadd.f32 %v653, %v740
        %v742 = vpop.f32.mrb[0].mxu0
        %743 = vdwg.mxu0
        %v744 = vmax.f32 %v738, 0.0
        %v745 = vmax.f32 %v741, 0.0
        %v746 = vld [vmem:[#allocation11] sm:$0xf]
        %v747 = vld [vmem:[#allocation11 + $0x4] sm:$0xf]
        %v748 = vld [vmem:[#allocation11 + $0x8] sm:$0xf]
        %v749 = vld [vmem:[#allocation11 + $0xc] sm:$0xf]
        %v750 = vld [vmem:[#allocation11 + $0x10] sm:$0xf]
        %v751 = vld [vmem:[#allocation11 + $0x14] sm:$0xf]
        %v752 = vld [vmem:[#allocation11 + $0x18] sm:$0xf]
        %v753 = vld [vmem:[#allocation11 + $0x1c] sm:$0xf]
        %v754 = vld [vmem:[#allocation11 + $0x20] sm:$0xf]
        %v755 = vld [vmem:[#allocation11 + $0x24] sm:$0xf]
        %v756 = vld [vmem:[#allocation11 + $0x28] sm:$0xf]
        %v757 = vld [vmem:[#allocation11 + $0x2c] sm:$0xf]
        %v758 = vld [vmem:[#allocation11 + $0x30] sm:$0xf]
        %v759 = vld [vmem:[#allocation11 + $0x34] sm:$0xf]
        %v760 = vld [vmem:[#allocation11 + $0x38] sm:$0xf]
        %v761 = vld [vmem:[#allocation11 + $0x3c] sm:$0xf]
        %v762 = vld [vmem:[#allocation12] sm:$0x1]
        %v764 = vlaneseq
        %v765 = vshrl.u32 %v764, 7
        %v766 = vsub.s32 0, %v765
        %v767 = vrot.slane %v762, %v766
        %v785 = vunpack.c.l.b16 %v746
        %v786 = vunpack.c.l.b16 %v747
        %v787 = vunpack.c.l.b16 %v748
        %v788 = vunpack.c.l.b16 %v749
        %v789 = vunpack.c.l.b16 %v750
        %v790 = vunpack.c.l.b16 %v751
        %v791 = vunpack.c.l.b16 %v752
        %v792 = vunpack.c.l.b16 %v753
        %v793 = vunpack.c.l.b16 %v754
        %v794 = vunpack.c.l.b16 %v755
        %v795 = vunpack.c.l.b16 %v756
        %v796 = vunpack.c.l.b16 %v757
        %v797 = vunpack.c.l.b16 %v758
        %v798 = vunpack.c.l.b16 %v759
        %v799 = vunpack.c.l.b16 %v760
        %v800 = vunpack.c.l.b16 %v761
        %v801 = vpack.c.b16 %v786, %v785
        %v802 = vpack.c.b16 %v788, %v787
        %v803 = vpack.c.b16 %v790, %v789
        %v804 = vpack.c.b16 %v792, %v791
        %v805 = vpack.c.b16 %v794, %v793
        %v806 = vpack.c.b16 %v796, %v795
        %v807 = vpack.c.b16 %v798, %v797
        %v808 = vpack.c.b16 %v800, %v799
        %817 = vmatprep.subr.bf16.mxu0 0
        %818 = vmatpush1.bf16.msra.mxu0 %v801
        %819 = vmatprep.subr.bf16.mxu0 0
        %820 = vmatpush1.bf16.msra.mxu0 %v802
        %821 = vmatprep.subr.bf16.mxu0 0
        %822 = vmatpush1.bf16.msra.mxu0 %v803
        %823 = vmatprep.subr.bf16.mxu0 0
        %824 = vmatpush1.bf16.msra.mxu0 %v804
        %825 = vmatprep.subr.bf16.mxu0 0
        %826 = vmatpush1.bf16.msra.mxu0 %v805
        %827 = vmatprep.subr.bf16.mxu0 0
        %828 = vmatpush1.bf16.msra.mxu0 %v806
        %829 = vmatprep.subr.bf16.mxu0 0
        %830 = vmatpush1.bf16.msra.mxu0 %v807
        %831 = vmatprep.subr.bf16.mxu0 0
        %832 = vmatpush1.bf16.msra.mxu0 %v808
        %833 = vmatprep.subr.bf16.mxu0 0
        %834 = vmatpush1.bf16.msra.mxu0 0
        %835 = vmatprep.subr.bf16.mxu0 0
        %836 = vmatpush1.bf16.msra.mxu0 0
        %837 = vmatprep.subr.bf16.mxu0 0
        %838 = vmatpush1.bf16.msra.mxu0 0
        %839 = vmatprep.subr.bf16.mxu0 0
        %840 = vmatpush1.bf16.msra.mxu0 0
        %841 = vmatprep.subr.bf16.mxu0 0
        %842 = vmatpush1.bf16.msra.mxu0 0
        %843 = vmatprep.subr.bf16.mxu0 0
        %844 = vmatpush1.bf16.msra.mxu0 0
        %845 = vmatprep.subr.bf16.mxu0 0
        %846 = vmatpush1.bf16.msra.mxu0 0
        %847 = vmatprep.subr.bf16.mxu0 0
        %848 = vmatpush1.bf16.msra.mxu0 0
        %849 = vmatprep.mubr.bf16.mxu0 0
        %850 = vmatmul.mubr.bf16.gmra.mrb[0].mxu0 %v631
        %v851 = vpop.f32.mrb[0].mxu0
        %v852 = vadd.f32 %v767, %v851
        %v853 = vpop.f32.mrb[0].mxu0
        %v854 = vpop.f32.mrb[0].mxu0
        %v855 = vpop.f32.mrb[0].mxu0
        %856 = vdwg.mxu0
        %v857 = vmax.f32 %v852, 0.0
        %v858 = vpack.c.bf16 %v745, %v744
        %v859 = vpack.c.bf16 %v857, %v857
        %v860 = vld [vmem:[#allocation14] sm:$0x3]
        %v863 = vunpack.c.l.s4 1966171168
        %v864 = vunpack.c.0.s8 %v863
        %v865 = vlaneseq
        %v866 = vshrl.u32 %v865, 7
        %v867 = vsub.s32 %v864, %v866
        %v868 = vrot.slane %v860, %v867
        %v869 = vcombine.high %v868, %v868
        %v870 = vunpack.i.l.s16 %v868
        %v871 = vunpack.i.h.s16 %v868
        %v872 = vunpack.i.l.s16 %v869
        %v873 = vunpack.i.h.s16 %v869
        %v874 = vpack.i.b16 %v870, %v870
        %v875 = vpack.i.b16 %v871, %v871
        %v876 = vpack.i.b16 %v872, %v872
        %v877 = vpack.i.b16 %v873, %v873
        %v878 = vlaneseq
        %v879 = vshrl.u32 %v878, 7
        %v880 = vsub.s32 0, %v879
        %v881 = vrot.slane %v874, %v880
        %v882 = vlaneseq
        %v883 = vshrl.u32 %v882, 7
        %v884 = vsub.s32 0, %v883
        %v885 = vrot.slane %v875, %v884
        %v886 = vlaneseq
        %v887 = vshrl.u32 %v886, 7
        %v888 = vsub.s32 0, %v887
        %v889 = vrot.slane %v876, %v888
        %v890 = vlaneseq
        %v891 = vshrl.u32 %v890, 7
        %v892 = vsub.s32 0, %v891
        %v893 = vrot.slane %v877, %v892
        %v895 = vpack.i.b16 %v881, %v881
        %v897 = vlaneseq
        %v898 = vshrl.u32 %v897, 7
        %v899 = vsub.s32 0, %v898
        %v900 = vrot.slane %v895, %v899
        %v902 = vpack.i.b16 %v885, %v885
        %v904 = vlaneseq
        %v905 = vshrl.u32 %v904, 7
        %v906 = vsub.s32 0, %v905
        %v907 = vrot.slane %v902, %v906
        %v909 = vpack.i.b16 %v889, %v889
        %v911 = vlaneseq
        %v912 = vshrl.u32 %v911, 7
        %v913 = vsub.s32 0, %v912
        %v914 = vrot.slane %v909, %v913
        %v916 = vpack.i.b16 %v893, %v893
        %v918 = vlaneseq
        %v919 = vshrl.u32 %v918, 7
        %v920 = vsub.s32 0, %v919
        %v921 = vrot.slane %v916, %v920
        %v922 = vmul.bf16 %v858, %v900
        %v923 = vmul.bf16 %v858, %v907
        %v924 = vmul.bf16 %v858, %v914
        %v925 = vmul.bf16 %v858, %v921
        %v926 = vld [vmem:[#allocation15] sm:$0x1]
        %v928 = vlaneseq
        %v929 = vshrl.u32 %v928, 7
        %v930 = vsub.s32 0, %v929
        %v931 = vrot.slane %v926, %v930
        %933 = vmatprep.subr.bf16.mxu0 0
        %934 = vmatpush1.bf16.xpose.msra.mxu0 %v922
        %935 = vmatprep.subr.bf16.mxu0 0
        %936 = vmatpush1.bf16.xpose.msra.mxu0 %v923
        %937 = vmatprep.subr.bf16.mxu0 0
        %938 = vmatpush1.bf16.xpose.msra.mxu0 %v924
        %939 = vmatprep.subr.bf16.mxu0 0
        %940 = vmatpush1.bf16.xpose.msra.mxu0 %v925
        %941 = vmatprep.subr.bf16.mxu0 0
        %942 = vmatpush1.bf16.xpose.msra.mxu0 0
        %943 = vmatprep.subr.bf16.mxu0 0
        %944 = vmatpush1.bf16.xpose.msra.mxu0 0
        %945 = vmatprep.subr.bf16.mxu0 0
        %946 = vmatpush1.bf16.xpose.msra.mxu0 0
        %947 = vmatprep.subr.bf16.mxu0 0
        %948 = vmatpush1.bf16.xpose.msra.mxu0 0
        %949 = vmatprep.subr.bf16.mxu0 0
        %950 = vmatpush1.bf16.xpose.msra.mxu0 0
        %951 = vmatprep.subr.bf16.mxu0 0
        %952 = vmatpush1.bf16.xpose.msra.mxu0 0
        %953 = vmatprep.subr.bf16.mxu0 0
        %954 = vmatpush1.bf16.xpose.msra.mxu0 0
        %955 = vmatprep.subr.bf16.mxu0 0
        %956 = vmatpush1.bf16.xpose.msra.mxu0 0
        %957 = vmatprep.subr.bf16.mxu0 0
        %958 = vmatpush1.bf16.xpose.msra.mxu0 0
        %959 = vmatprep.subr.bf16.mxu0 0
        %960 = vmatpush1.bf16.xpose.msra.mxu0 0
        %961 = vmatprep.subr.bf16.mxu0 0
        %962 = vmatpush1.bf16.xpose.msra.mxu0 0
        %963 = vmatprep.subr.bf16.mxu0 0
        %964 = vmatpush1.bf16.xpose.msra.mxu0 0
        %965 = vmatprep.mubr.bf16.mxu0 0
        %966 = vmatmul.mubr.bf16.gmra.mrb[0].mxu0 %v859
        %v967 = vpop.f32.mrb[0].mxu0
        %v968 = vadd.f32 %v931, %v967
        %v969 = vpop.f32.mrb[0].mxu0
        %v970 = vpop.f32.mrb[0].mxu0
        %v971 = vpop.f32.mrb[0].mxu0
        %972 = vdwg.mxu0
        %v973 = vpack.c.bf16 %v968, %v968
        %vm974 = vcmask 519168
        %975 = vst.msk [vmem:[%s625] sm:$0xf] %vm974, %v973
        %v976 = vld [vmem:[#allocation17] sm:$0x1]
        %v978 = vlaneseq
        %v979 = vshrl.u32 %v978, 7
        %v980 = vsub.s32 0, %v979
        %v981 = vrot.slane %v976, %v980
        %v983 = vmul.f32 %v857, %v981
        %v984 = vld [vmem:[#allocation2] sm:$0x1]
        %v986 = vlaneseq
        %v987 = vshrl.u32 %v986, 7
        %v988 = vsub.s32 0, %v987
        %v989 = vrot.slane %v984, %v988
        %990 = vset.pattern.permute.xlu0 0
        %991 = vperm.xlu0 %990, %v989
        %v992 = vpop.permute.xlu0 %991
        %994 = vmatprep.subr.mxu0 0.0
        %995 = vmatpush1.xpose.msra.mxu0 %v744
        %996 = vmatprep.subr.mxu0 0.0
        %997 = vmatpush1.xpose.msra.mxu0 %v745
        %998 = vmatprep.subr.mxu0 0.0
        %999 = vmatpush1.xpose.msra.mxu0 0.0
        %1000 = vmatprep.subr.mxu0 0.0
        %1001 = vmatpush1.xpose.msra.mxu0 0.0
        %1002 = vmatprep.subr.mxu0 0.0
        %1003 = vmatpush1.xpose.msra.mxu0 0.0
        %1004 = vmatprep.subr.mxu0 0.0
        %1005 = vmatpush1.xpose.msra.mxu0 0.0
        %1006 = vmatprep.subr.mxu0 0.0
        %1007 = vmatpush1.xpose.msra.mxu0 0.0
        %1008 = vmatprep.subr.mxu0 0.0
        %1009 = vmatpush1.xpose.msra.mxu0 0.0
        %1010 = vmatprep.subr.mxu0 0.0
        %1011 = vmatpush1.xpose.msra.mxu0 0.0
        %1012 = vmatprep.subr.mxu0 0.0
        %1013 = vmatpush1.xpose.msra.mxu0 0.0
        %1014 = vmatprep.subr.mxu0 0.0
        %1015 = vmatpush1.xpose.msra.mxu0 0.0
        %1016 = vmatprep.subr.mxu0 0.0
        %1017 = vmatpush1.xpose.msra.mxu0 0.0
        %1018 = vmatprep.subr.mxu0 0.0
        %1019 = vmatpush1.xpose.msra.mxu0 0.0
        %1020 = vmatprep.subr.mxu0 0.0
        %1021 = vmatpush1.xpose.msra.mxu0 0.0
        %1022 = vmatprep.subr.mxu0 0.0
        %1023 = vmatpush1.xpose.msra.mxu0 0.0
        %1024 = vmatprep.subr.mxu0 0.0
        %1025 = vmatpush1.xpose.msra.mxu0 0.0
        %1026 = vmatprep.subr.mxu0 0.0
        %1027 = vmatpush1.xpose.msra.mxu0 0.0
        %1028 = vmatprep.subr.mxu0 0.0
        %1029 = vmatpush1.xpose.msra.mxu0 0.0
        %1030 = vmatprep.subr.mxu0 0.0
        %1031 = vmatpush1.xpose.msra.mxu0 0.0
        %1032 = vmatprep.subr.mxu0 0.0
        %1033 = vmatpush1.xpose.msra.mxu0 0.0
        %1034 = vmatprep.subr.mxu0 0.0
        %1035 = vmatpush1.xpose.msra.mxu0 0.0
        %1036 = vmatprep.subr.mxu0 0.0
        %1037 = vmatpush1.xpose.msra.mxu0 0.0
        %1038 = vmatprep.subr.mxu0 0.0
        %1039 = vmatpush1.xpose.msra.mxu0 0.0
        %1040 = vmatprep.subr.mxu0 0.0
        %1041 = vmatpush1.xpose.msra.mxu0 0.0
        %1042 = vmatprep.subr.mxu0 0.0
        %1043 = vmatpush1.xpose.msra.mxu0 0.0
        %1044 = vmatprep.subr.mxu0 0.0
        %1045 = vmatpush1.xpose.msra.mxu0 0.0
        %1046 = vmatprep.subr.mxu0 0.0
        %1047 = vmatpush1.xpose.msra.mxu0 0.0
        %1048 = vmatprep.subr.mxu0 0.0
        %1049 = vmatpush1.xpose.msra.mxu0 0.0
        %1050 = vmatprep.subr.mxu0 0.0
        %1051 = vmatpush1.xpose.msra.mxu0 0.0
        %1052 = vmatprep.subr.mxu0 0.0
        %1053 = vmatpush1.xpose.msra.mxu0 0.0
        %1054 = vmatprep.subr.mxu0 0.0
        %1055 = vmatpush1.xpose.msra.mxu0 0.0
        %1056 = vmatprep.subr.mxu0 0.0
        %1057 = vmatpush1.xpose.msra.mxu0 0.0
        %1058 = vmatprep.mubr.f32.mxu0 0.0
        %1059 = vmatmul.mubr.f32.gmra.mrb[0].mxu0 %v983
        %v1060 = vpop.f32.mrb[0].mxu0
        %v1061 = vadd.f32 %v992, %v1060
        %v1062 = vpop.f32.mrb[0].mxu0
        %1063 = vdwg.mxu0
        %vm1064 = vcmask 130048
        %v1066 = vsel %vm1064, %v1061, 0
        %1068 = vmatprep.subr.mxu0 0.0
        %1069 = vmatpush1.msra.mxu0 %v744
        %1070 = vmatprep.subr.mxu0 0.0
        %1071 = vmatpush1.msra.mxu0 %v745
        %1072 = vmatprep.subr.mxu0 0.0
        %1073 = vmatpush1.msra.mxu0 0.0
        %1074 = vmatprep.subr.mxu0 0.0
        %1075 = vmatpush1.msra.mxu0 0.0
        %1076 = vmatprep.subr.mxu0 0.0
        %1077 = vmatpush1.msra.mxu0 0.0
        %1078 = vmatprep.subr.mxu0 0.0
        %1079 = vmatpush1.msra.mxu0 0.0
        %1080 = vmatprep.subr.mxu0 0.0
        %1081 = vmatpush1.msra.mxu0 0.0
        %1082 = vmatprep.subr.mxu0 0.0
        %1083 = vmatpush1.msra.mxu0 0.0
        %1084 = vmatprep.subr.mxu0 0.0
        %1085 = vmatpush1.msra.mxu0 0.0
        %1086 = vmatprep.subr.mxu0 0.0
        %1087 = vmatpush1.msra.mxu0 0.0
        %1088 = vmatprep.subr.mxu0 0.0
        %1089 = vmatpush1.msra.mxu0 0.0
        %1090 = vmatprep.subr.mxu0 0.0
        %1091 = vmatpush1.msra.mxu0 0.0
        %1092 = vmatprep.subr.mxu0 0.0
        %1093 = vmatpush1.msra.mxu0 0.0
        %1094 = vmatprep.subr.mxu0 0.0
        %1095 = vmatpush1.msra.mxu0 0.0
        %1096 = vmatprep.subr.mxu0 0.0
        %1097 = vmatpush1.msra.mxu0 0.0
        %1098 = vmatprep.subr.mxu0 0.0
        %1099 = vmatpush1.msra.mxu0 0.0
        %1100 = vmatprep.subr.mxu0 0.0
        %1101 = vmatpush1.msra.mxu0 0.0
        %1102 = vmatprep.subr.mxu0 0.0
        %1103 = vmatpush1.msra.mxu0 0.0
        %1104 = vmatprep.subr.mxu0 0.0
        %1105 = vmatpush1.msra.mxu0 0.0
        %1106 = vmatprep.subr.mxu0 0.0
        %1107 = vmatpush1.msra.mxu0 0.0
        %1108 = vmatprep.subr.mxu0 0.0
        %1109 = vmatpush1.msra.mxu0 0.0
        %1110 = vmatprep.subr.mxu0 0.0
        %1111 = vmatpush1.msra.mxu0 0.0
        %1112 = vmatprep.subr.mxu0 0.0
        %1113 = vmatpush1.msra.mxu0 0.0
        %1114 = vmatprep.subr.mxu0 0.0
        %1115 = vmatpush1.msra.mxu0 0.0
        %1116 = vmatprep.subr.mxu0 0.0
        %1117 = vmatpush1.msra.mxu0 0.0
        %1118 = vmatprep.subr.mxu0 0.0
        %1119 = vmatpush1.msra.mxu0 0.0
        %1120 = vmatprep.subr.mxu0 0.0
        %1121 = vmatpush1.msra.mxu0 0.0
        %1122 = vmatprep.subr.mxu0 0.0
        %1123 = vmatpush1.msra.mxu0 0.0
        %1124 = vmatprep.subr.mxu0 0.0
        %1125 = vmatpush1.msra.mxu0 0.0
        %1126 = vmatprep.subr.mxu0 0.0
        %1127 = vmatpush1.msra.mxu0 0.0
        %1128 = vmatprep.subr.mxu0 0.0
        %1129 = vmatpush1.msra.mxu0 0.0
        %1130 = vmatprep.subr.mxu0 0.0
        %1131 = vmatpush1.msra.mxu0 0.0
        %1132 = vmatprep.mubr.f32.mxu0 0.0
        %1133 = vmatmul.mubr.f32.gmra.mrb[0].mxu0 %v1066
        %v1134 = vpop.f32.mrb[0].mxu0
        %v1135 = vadd.f32 0.0, %v1134
        %v1136 = vpop.f32.mrb[0].mxu0
        %1137 = vdwg.mxu0
        %v1138 = vmul.f32 %v857, %v1135
        %v1139 = vrot.slane %v1138, 4
        %v1140 = vadd.f32 %v1138, %v1139
        %v1141 = vrot.slane %v1140, 2
        %v1142 = vadd.f32 %v1140, %v1141
        %v1143 = vrot.slane %v1142, 1
        %v1144 = vadd.f32 %v1142, %v1143
        %v1145 = vld [vmem:[#allocation18] sm:$0xff]
        %v1146 = vld [vmem:[#allocation18 + $0x8] sm:$0xff]
        %v1147 = vld [vmem:[#allocation18 + $0x10] sm:$0xff]
        %v1148 = vld [vmem:[#allocation18 + $0x18] sm:$0xff]
        %v1149 = vld [vmem:[#allocation18 + $0x20] sm:$0xff]
        %v1150 = vld [vmem:[#allocation18 + $0x28] sm:$0xff]
        %v1151 = vld [vmem:[#allocation18 + $0x30] sm:$0xff]
        %v1152 = vld [vmem:[#allocation18 + $0x38] sm:$0xff]
        %v1153 = vld [vmem:[#allocation18 + $0x40] sm:$0xff]
        %v1154 = vld [vmem:[#allocation18 + $0x48] sm:$0xff]
        %v1155 = vld [vmem:[#allocation18 + $0x50] sm:$0xff]
        %v1156 = vld [vmem:[#allocation18 + $0x58] sm:$0xff]
        %v1157 = vld [vmem:[#allocation18 + $0x60] sm:$0xff]
        %v1158 = vld [vmem:[#allocation18 + $0x68] sm:$0xff]
        %v1159 = vld [vmem:[#allocation18 + $0x70] sm:$0xff]
        %v1160 = vld [vmem:[#allocation18 + $0x78] sm:$0xff]
        %v1161 = vld [vmem:[#allocation20] sm:$0x1]
        %1162 = vmatprep.subr.mxu0 0.0
        %1163 = vmatpush1.msra.mxu0 %v1145
        %1164 = vmatprep.subr.mxu0 0.0
        %1165 = vmatpush1.msra.mxu0 %v1146
        %1166 = vmatprep.subr.mxu0 0.0
        %1167 = vmatpush1.msra.mxu0 %v1147
        %1168 = vmatprep.subr.mxu0 0.0
        %1169 = vmatpush1.msra.mxu0 %v1148
        %1170 = vmatprep.subr.mxu0 0.0
        %1171 = vmatpush1.msra.mxu0 %v1149
        %1172 = vmatprep.subr.mxu0 0.0
        %1173 = vmatpush1.msra.mxu0 %v1150
        %1174 = vmatprep.subr.mxu0 0.0
        %1175 = vmatpush1.msra.mxu0 %v1151
        %1176 = vmatprep.subr.mxu0 0.0
        %1177 = vmatpush1.msra.mxu0 %v1152
        %1178 = vmatprep.subr.mxu0 0.0
        %1179 = vmatpush1.msra.mxu0 %v1153
        %1180 = vmatprep.subr.mxu0 0.0
        %1181 = vmatpush1.msra.mxu0 %v1154
        %1182 = vmatprep.subr.mxu0 0.0
        %1183 = vmatpush1.msra.mxu0 %v1155
        %1184 = vmatprep.subr.mxu0 0.0
        %1185 = vmatpush1.msra.mxu0 %v1156
        %1186 = vmatprep.subr.mxu0 0.0
        %1187 = vmatpush1.msra.mxu0 %v1157
        %1188 = vmatprep.subr.mxu0 0.0
        %1189 = vmatpush1.msra.mxu0 %v1158
        %1190 = vmatprep.subr.mxu0 0.0
        %1191 = vmatpush1.msra.mxu0 %v1159
        %1192 = vmatprep.subr.mxu0 0.0
        %1193 = vmatpush1.msra.mxu0 %v1160
        %1194 = vmatprep.subr.mxu0 0.0
        %1195 = vmatpush1.msra.mxu0 0.0
        %1196 = vmatprep.subr.mxu0 0.0
        %1197 = vmatpush1.msra.mxu0 0.0
        %1198 = vmatprep.subr.mxu0 0.0
        %1199 = vmatpush1.msra.mxu0 0.0
        %1200 = vmatprep.subr.mxu0 0.0
        %1201 = vmatpush1.msra.mxu0 0.0
        %1202 = vmatprep.subr.mxu0 0.0
        %1203 = vmatpush1.msra.mxu0 0.0
        %1204 = vmatprep.subr.mxu0 0.0
        %1205 = vmatpush1.msra.mxu0 0.0
        %1206 = vmatprep.subr.mxu0 0.0
        %1207 = vmatpush1.msra.mxu0 0.0
        %1208 = vmatprep.subr.mxu0 0.0
        %1209 = vmatpush1.msra.mxu0 0.0
        %1210 = vmatprep.subr.mxu0 0.0
        %1211 = vmatpush1.msra.mxu0 0.0
        %1212 = vmatprep.subr.mxu0 0.0
        %1213 = vmatpush1.msra.mxu0 0.0
        %1214 = vmatprep.subr.mxu0 0.0
        %1215 = vmatpush1.msra.mxu0 0.0
        %1216 = vmatprep.subr.mxu0 0.0
        %1217 = vmatpush1.msra.mxu0 0.0
        %1218 = vmatprep.subr.mxu0 0.0
        %1219 = vmatpush1.msra.mxu0 0.0
        %1220 = vmatprep.subr.mxu0 0.0
        %1221 = vmatpush1.msra.mxu0 0.0
        %1222 = vmatprep.subr.mxu0 0.0
        %1223 = vmatpush1.msra.mxu0 0.0
        %1224 = vmatprep.subr.mxu0 0.0
        %1225 = vmatpush1.msra.mxu0 0.0
        %1226 = vmatprep.mubr.f32.mxu0 0.0
        %1227 = vmatmul.mubr.f32.gmra.mrb[0].mxu0 %v1144
        %v1228 = vpop.f32.mrb[0].mxu0
        %v1229 = vadd.f32 %v1161, %v1228
        %v1230 = vpop.f32.mrb[0].mxu0
        %1231 = vdwg.mxu0
        %vm1232 = vcmask 253952
        %1233 = vst.msk [vmem:[%s618] sm:$0x1] %vm1232, %v1229
        %s1234 = sand.u32 %s313, 1
        %s1235 = scalar_lea.sflag [#allocation5], %s1234
        %s1236 = sand.u32 %s313, 1
        %s1237 = scalar_lea.vmem [#allocation21], %s1236
        %s1238 = sand.u32 %s339, 1
        %s1239 = scalar_lea.sflag [#allocation23], %s1238
        %s1240 = sand.u32 %s339, 1
        %s1241 = smul.addr %s1240, 4
        %s1242 = scalar_lea.vmem [#allocation22], %s1241
        // Predicated region
        $region113: #{tpu_custom_call.1} parent=67 // pred_check
          %p1243 = pneg %p323
        $region114: #{tpu_custom_call.1} parent=67 // pred_check_branch
          %1245 = sbr.rel (%p1243) target = $region116
        $region115: #{tpu_custom_call.1} parent=67 // pred_region
          %s1247 = ssub.s32 16, 16
          %1248 = vsyncadd %s1235, %s1247
          %s1249 = smul.addr %s43, 16
          %s1250 = scalar_lea.hbm %s12, %s1249
          %s1252 = sshll.u32 %s1237, 4
          %s1253 = int_to_ptr.vmem [resolvable:$true] %s1252
          %1255 = dma.vmem_to_hbm [thread:$0]  %s1253, 16, %s1250, %s1235
        $region116: #{tpu_custom_call.1} parent=67 // pred_fallthru
          _
        // Predicated region
        $region117: #{tpu_custom_call.1} parent=67 // pred_check
          %p1256 = pneg %p349
        $region118: #{tpu_custom_call.1} parent=67 // pred_check_branch
          %1258 = sbr.rel (%p1256) target = $region120
        $region119: #{tpu_custom_call.1} parent=67 // pred_region
          %s1260 = ssub.s32 64, 64
          %1261 = vsyncadd %s1239, %s1260
          %s1262 = smul.addr %s43, 64
          %s1263 = scalar_lea.hbm %s13, %s1262
          %s1265 = sshll.u32 %s1242, 4
          %s1266 = int_to_ptr.vmem [resolvable:$true] %s1265
          %1268 = dma.vmem_to_hbm [thread:$0]  %s1266, 64, %s1263, %s1239
        $region120: #{tpu_custom_call.1} parent=67 // pred_fallthru
          _
      $region68: #{tpu_custom_call.1} parent=5 // pred_fallthru
        _
      %p1269 = scmp.le.s32.totalorder 2, %s38
      // Predicated region
      $region121: #{tpu_custom_call.1} parent=5 // pred_check
        %p1270 = pneg %p1269
      $region122: #{tpu_custom_call.1} parent=5 // pred_check_branch
        %1272 = sbr.rel (%p1270) target = $region124
      $region123: #{tpu_custom_call.1} parent=5 // pred_region
        %s1273 = ssub.s32 %s38, 2
        // Predicated region
        $region125: #{tpu_custom_call.1} parent=123 // pred_check
          %p1274 = pneg %p329
        $region126: #{tpu_custom_call.1} parent=123 // pred_check_branch
          %1276 = sbr.rel (%p1274) target = $region128
        $region127: #{tpu_custom_call.1} parent=123 // pred_region
          %s1277 = sand.u32 %s314, 1
          %s1278 = scalar_lea.sflag [#allocation5], %s1277
          %s1279 = sand.u32 %s314, 1
          %s1280 = scalar_lea.vmem [#allocation21], %s1279
          %1281 = dma.done %s1278, 16
        $region128: #{tpu_custom_call.1} parent=123 // pred_fallthru
          _
        // Predicated region
        $region129: #{tpu_custom_call.1} parent=123 // pred_check
          %p1282 = pneg %p355
        $region130: #{tpu_custom_call.1} parent=123 // pred_check_branch
          %1284 = sbr.rel (%p1282) target = $region132
        $region131: #{tpu_custom_call.1} parent=123 // pred_region
          %s1285 = sand.u32 %s340, 1
          %s1286 = scalar_lea.sflag [#allocation23], %s1285
          %s1287 = sand.u32 %s340, 1
          %s1288 = smul.addr %s1287, 4
          %s1289 = scalar_lea.vmem [#allocation22], %s1288
          %1290 = dma.done %s1286, 64
        $region132: #{tpu_custom_call.1} parent=123 // pred_fallthru
          _
      $region124: #{tpu_custom_call.1} parent=5 // pred_fallthru
        _
    $region6: #{tpu_custom_call.1} parent=1 // loop_footer
      %s42 = sadd.s32 1, %s38
    $region7: #{tpu_custom_call.1} parent=1 // loop_footer_branch
      %37 = sbr.rel target = $region3
    $region8: #{tpu_custom_call.1} parent=1 // loop_exit
      _
    %1291 = vsyncpa [#allocation4], 1
    %s1292 = scalar_lea.sflag [#allocation4], 1
    %1293 = vsyncpa %s1292, 1
    %1294 = vsyncpa [#allocation7], 1
    %s1295 = scalar_lea.sflag [#allocation7], 1
    %1296 = vsyncpa %s1295, 1
    %1297 = vsyncpa [#allocation10], 1
    %1298 = vsyncpa [#allocation13], 1
    %1299 = vsyncpa [#allocation16], 1
    %1300 = vsyncpa [#allocation19], 1
    %1301 = vsyncpa [#allocation5], 1
    %s1302 = scalar_lea.sflag [#allocation5], 1
    %1303 = vsyncpa %s1302, 1
    %1304 = vsyncpa [#allocation23], 1
    %s1305 = scalar_lea.sflag [#allocation23], 1
    %1306 = vsyncpa %s1305, 1

</llo_original>
